<compile_context>
chip_gen: v7x
topology: tpu7x:2x2x1
jax: 0.10.0
libtpu: 0.0.40
codegen_flags: <defaults>
</compile_context>

<pallas_src>
import jax
import jax.numpy as jnp
from jax import lax
from jax.experimental import pallas as pl
from jax.experimental.pallas import tpu as pltpu

EPS = 1e-5


def _round_up(x, m):
    return (x + m - 1) // m * m


def _choose_block_b(B):
    """Batch tile: big enough to amortize ~0.35us/step grid overhead and the serial
    T-step GRU chain, small enough to keep >=2 grid steps (v7x megacore, pipelining)
    and to fit VMEM comfortably on v5e/v6e/v7x."""
    if B <= 8:
        return 8
    return min(1024, _round_up(pl.cdiv(B, 2), 8))


def fusion_kernel(
    x_ref,      # (T, TB, D)   time-major combined_his_embeds block
    zls_ref,    # (TB, 2D)     [z_l | z_s]
    side_ref,   # (TB, S)      [item | cat | con | qlt]
    w_ih_ref,   # (D, 3H)      fused GRU input weights, column order [r | z | n]
    w_hh_ref,   # (H, 3H)      fused GRU hidden weights
    wa1_ref,    # (H+2D, H)    mlp_alpha Linear 1
    wp1_ref,    # (D+S, O)     mlp_pred Linear 1 (BN2 pre-folded)
    wp2_ref,    # (O, Opad)    mlp_pred Linear 2, zero-padded to lane-dense width
    vec_ref,    # (8, VC)      packed row vectors (see wrapper for row layout)
    out_ref,    # (TB, Opad)
):
    T, TB, D = x_ref.shape
    H = w_hh_ref.shape[0]
    G = 3 * H
    O = wp2_ref.shape[0]
    O_pad = wp2_ref.shape[1]

    # Packed small vectors: a single resident tile -> a single DMA descriptor.
    b_x = vec_ref[0:1, :G]        # b_ir+b_hr | b_iz+b_hz | b_in
    b_h = vec_ref[1:2, :G]        # 0 | 0 | b_hn
    ba1 = vec_ref[2:3, :H]
    wa2_row = vec_ref[3:4, :H]    # BN1-folded second mlp_alpha Linear, as a row
    ba2 = vec_ref[4:5, :1]
    bp1 = vec_ref[5:6, :O]        # BN2-folded
    bp2 = vec_ref[6:7, :O_pad]    # zero in the padded lanes

    # ---------------- GRU (batch_first in the module; time-major here) ----------------
    # Hoisted input projection: one MXU matmul covering all T steps.  Time-major layout
    # makes the per-step slice xp[t] a contiguous leading-axis slice (no sublane gather).
    x2 = x_ref[...].reshape(T * TB, D)
    xp = jnp.dot(x2, w_ih_ref[...], preferred_element_type=jnp.float32) + b_x
    xp = xp.reshape(T, TB, G)

    w_hh = w_hh_ref[...]
    h = jnp.zeros((TB, H), jnp.float32)
    # Fully unrolled: T is small & static.  The chain is strictly serial (each step's
    # h @ W_hh depends on the previous step's sigmoid/tanh); block width is the lever.
    for t in range(T):
        g_x = xp[t]                                                    # (TB, 3H)
        g_h = jnp.dot(h, w_hh, preferred_element_type=jnp.float32) + b_h
        rz = jax.nn.sigmoid(g_x[:, :2 * H] + g_h[:, :2 * H])           # r & z in one pass
        r = rz[:, :H]
        z = rz[:, H:]
        n = jnp.tanh(g_x[:, 2 * H:] + r * g_h[:, 2 * H:])
        h = n + z * (h - n)                                            # (1-z)*n + z*h
    h_l = h

    # ---- mlp_alpha: Linear -> ReLU -> BN1(folded) -> (Dropout=id) -> Linear -> Sigmoid
    zls = zls_ref[...]
    wa1 = wa1_ref[...]
    a = (jnp.dot(h_l, wa1[:H, :], preferred_element_type=jnp.float32)
         + jnp.dot(zls, wa1[H:, :], preferred_element_type=jnp.float32)
         + ba1)
    a = jnp.maximum(a, 0.0)
    # TODO(synk): Dropout is identity (inference mode); training-mode mask not reproduced.
    # (H,1) matmul replaced by a lane reduction; BN1 folded into wa2_row / ba2.
    alpha = jax.nn.sigmoid(jnp.sum(a * wa2_row, axis=-1, keepdims=True) + ba2)  # (TB, 1)

    # ---------------- gated fusion ----------------
    z_l = zls[:, :D]
    z_s = zls[:, D:]
    z_t = z_s + alpha * (z_l - z_s)

    # ---- mlp_pred: Linear(+BN2 folded) -> (Dropout=id) -> Linear -> Sigmoid
    wp1 = wp1_ref[...]
    p = (jnp.dot(z_t, wp1[:D, :], preferred_element_type=jnp.float32)
         + jnp.dot(side_ref[...], wp1[D:, :], preferred_element_type=jnp.float32)
         + bp1)
    y = jax.nn.sigmoid(
        jnp.dot(p, wp2_ref[...], preferred_element_type=jnp.float32) + bp2)
    out_ref[...] = y          # lane-dense (TB, Opad) unmasked store


def prepare_kernel_params(params, eps=EPS):
    """Host-side weight refactoring: gate fusion + eval-mode BN folding (exact)."""
    w_ih = params["w_ih"]           # (3, D, H), gate order (r, z, n), pre-transposed
    w_hh = params["w_hh"]           # (3, H, H)
    b_ih = params["b_ih"]           # (3, 1, H)
    b_hh = params["b_hh"]           # (3, 1, H)

    w_ih_f = jnp.concatenate([w_ih[0], w_ih[1], w_ih[2]], axis=1)   # (D, 3H)
    w_hh_f = jnp.concatenate([w_hh[0], w_hh[1], w_hh[2]], axis=1)   # (H, 3H)
    b_x_f = jnp.concatenate([b_ih[0] + b_hh[0], b_ih[1] + b_hh[1], b_ih[2]], axis=1)
    b_h_f = jnp.concatenate([jnp.zeros_like(b_hh[0]), jnp.zeros_like(b_hh[1]),
                             b_hh[2]], axis=1)

    # BN1 sits AFTER the ReLU -> fold it forward into the second mlp_alpha Linear.
    g1, be1, m1, v1 = params["bn1"]                 # each (1, H)
    sc1 = g1 * lax.rsqrt(v1 + eps)                  # (1, H)
    wa2 = params["wa2"]                             # (H, 1)
    wa2_row = (wa2[:, 0] * sc1[0]).reshape(1, -1)   # (1, H)
    ba2_f = params["ba2"] + jnp.sum((be1 - m1 * sc1)[0] * wa2[:, 0]).reshape(1, 1)

    # BN2 directly follows the first mlp_pred Linear -> fold it backward into wp1/bp1.
    g2, be2, m2, v2 = params["bn2"]                 # each (1, O)
    sc2 = g2 * lax.rsqrt(v2 + eps)
    wp1_f = params["wp1"] * sc2                     # scale columns
    bp1_f = (params["bp1"] - m2) * sc2 + be2

    return {
        "w_ih_f": w_ih_f, "w_hh_f": w_hh_f, "b_x_f": b_x_f, "b_h_f": b_h_f,
        "wa1": params["wa1"], "ba1": params["ba1"],
        "wa2_row": wa2_row, "ba2_f": ba2_f,
        "wp1_f": wp1_f, "bp1_f": bp1_f,
        "wp2": params["wp2"], "bp2": params["bp2"],
    }


def interest_fusion_forward(params, combined_his_embeds, z_l, z_s,
                            item_embeds, cat_embeds, con_embeds, qlt_embeds,
                            block_b=None):
    """combined_his_embeds is (B, T, D) like the PyTorch module (batch_first)."""
    B, T, D = combined_his_embeds.shape
    kp = prepare_kernel_params(params)
    H = kp["w_hh_f"].shape[0]
    O = kp["wp2"].shape[1]

    # Pre-concatenate once on the host: one K=2D matmul for [z_l|z_s] and one K=S
    # matmul for the side features instead of several tiny K=8 MXU pushes in-kernel.
    # TODO(synk): wo_con / wo_qlt variants only change this concat list (and wp1 rows).
    zls = jnp.concatenate([z_l, z_s], axis=1)                           # (B, 2D)
    side = jnp.concatenate([item_embeds, cat_embeds, con_embeds, qlt_embeds], axis=1)
    S = side.shape[1]

    # Batch tiling: pad B to a multiple of block_b (keeps the tile size and grid>=2
    # instead of collapsing to a single grid program for awkward batch sizes).
    if block_b is None:
        block_b = _choose_block_b(B)
    block_b = max(8, _round_up(int(block_b), 8))
    B_pad = _round_up(B, block_b)
    grid = (B_pad // block_b,)

    x_tbd = jnp.transpose(combined_his_embeds, (1, 0, 2))               # (T, B, D)
    if B_pad != B:
        pad = B_pad - B
        x_tbd = jnp.pad(x_tbd, ((0, 0), (0, pad), (0, 0)))
        zls = jnp.pad(zls, ((0, pad), (0, 0)))
        side = jnp.pad(side, ((0, pad), (0, 0)))

    # Lane-dense output: pad wp2/bp2 columns to a multiple of 128 so the final store
    # is an unmasked full-width vst.  Extra columns are sliced off below.
    O_pad = _round_up(O, 128)
    wp2_pad = jnp.pad(kp["wp2"], ((0, 0), (0, O_pad - O)))
    bp2_pad = jnp.pad(kp["bp2"], ((0, 0), (0, O_pad - O)))

    # Pack all small row vectors into a single resident (8, VC) tile.
    VC = _round_up(max(3 * H, H, O_pad, 1), 128)

    def _row(v):
        return jnp.pad(v.astype(jnp.float32), ((0, 0), (0, VC - v.shape[1])))

    vec = jnp.concatenate([
        _row(kp["b_x_f"]),     # row 0: fused GRU input+hidden biases (r,z) + b_in
        _row(kp["b_h_f"]),     # row 1: b_hn (kept inside r*(...))
        _row(kp["ba1"]),       # row 2
        _row(kp["wa2_row"]),   # row 3
        _row(kp["ba2_f"]),     # row 4
        _row(kp["bp1_f"]),     # row 5
        _row(bp2_pad),         # row 6
        jnp.zeros((1, VC), jnp.float32),   # row 7 (pad to 8 sublanes)
    ], axis=0)

    def resident(arr):
        return pl.BlockSpec(arr.shape, lambda i: (0,) * arr.ndim)

    in_specs = [
        pl.BlockSpec((T, block_b, D), lambda i: (0, i, 0)),   # x (time-major)
        pl.BlockSpec((block_b, 2 * D), lambda i: (i, 0)),     # [z_l | z_s]
        pl.BlockSpec((block_b, S), lambda i: (i, 0)),         # side features
        resident(kp["w_ih_f"]), resident(kp["w_hh_f"]),
        resident(kp["wa1"]), resident(kp["wp1_f"]),
        resident(wp2_pad), resident(vec),
    ]
    out_spec = pl.BlockSpec((block_b, O_pad), lambda i: (i, 0))

    # Advisory cost estimate so XLA schedules surrounding ops sensibly.
    flops = int(2 * B_pad * T * D * 3 * H          # hoisted input projection
                + 2 * B_pad * T * H * 3 * H        # recurrent matmuls
                + 2 * B_pad * (H + 2 * D) * H      # mlp_alpha Linear 1
                + 2 * B_pad * H                    # mlp_alpha reduce
                + 2 * B_pad * (D + S) * O          # mlp_pred Linear 1
                + 2 * B_pad * O * O_pad)           # mlp_pred Linear 2
    transcendentals = int(B_pad * (3 * H * T + 1 + O_pad))
    bytes_accessed = int(4 * (B_pad * (T * D + 2 * D + S + O_pad)
                              + D * 3 * H + H * 3 * H
                              + (H + 2 * D) * H + (D + S) * O + O * O_pad
                              + 8 * VC))

    out = pl.pallas_call(
        fusion_kernel,
        out_shape=jax.ShapeDtypeStruct((B_pad, O_pad), jnp.float32),
        grid=grid,
        in_specs=in_specs,
        out_specs=out_spec,
        compiler_params=pltpu.CompilerParams(
            dimension_semantics=("parallel",),
            vmem_limit_bytes=32 * 1024 * 1024),
        cost_estimate=pl.CostEstimate(flops=flops,
                                      transcendentals=transcendentals,
                                      bytes_accessed=bytes_accessed),
    )(x_tbd, zls, side,
      kp["w_ih_f"], kp["w_hh_f"], kp["wa1"], kp["wp1_f"], wp2_pad, vec)

    return out[:B, :O]


def reference_forward(params, x_btd, z_l, z_s, item, cat_e, con, qlt):
    """Pure-JAX mirror of the PyTorch forward (eval mode), unfused/unfolded weights."""
    B, T, D = x_btd.shape
    H = params["w_hh"].shape[2]
    w_ir, w_iz, w_in = params["w_ih"]
    w_hr, w_hz, w_hn = params["w_hh"]
    b_ir, b_iz, b_in = params["b_ih"]
    b_hr, b_hz, b_hn = params["b_hh"]
    h = jnp.zeros((B, H), jnp.float32)
    for t in range(T):
        x_t = x_btd[:, t, :]
        r = jax.nn.sigmoid(x_t @ w_ir + b_ir + h @ w_hr + b_hr)
        z = jax.nn.sigmoid(x_t @ w_iz + b_iz + h @ w_hz + b_hz)
        n = jnp.tanh(x_t @ w_in + b_in + r * (h @ w_hn + b_hn))
        h = (1.0 - z) * n + z * h
    ai = jnp.concatenate([h, z_l, z_s], axis=1)
    a = jnp.maximum(ai @ params["wa1"] + params["ba1"], 0.0)
    g1, be1, m1, v1 = params["bn1"]
    a = (a - m1) / jnp.sqrt(v1 + EPS) * g1 + be1
    alpha = jax.nn.sigmoid(a @ params["wa2"] + params["ba2"])
    z_t = alpha * z_l + (1.0 - alpha) * z_s
    ci = jnp.concatenate([z_t, item, cat_e, con, qlt], axis=1)
    p = ci @ params["wp1"] + params["bp1"]
    g2, be2, m2, v2 = params["bn2"]
    p = (p - m2) / jnp.sqrt(v2 + EPS) * g2 + be2
    return jax.nn.sigmoid(p @ params["wp2"] + params["bp2"])


def make_params(key, D, H, O, di, dc, dn, dq):
    """Deterministic synthetic parameters (PyTorch-like uniform init, non-trivial BN stats)."""
    ks = jax.random.split(key, 14)
    u = lambda k, shape, s: jax.random.uniform(k, shape, jnp.float32, -s, s)

    def bn_params(k, n):
        k1, k2, k3, k4 = jax.random.split(k, 4)
        gamma = jax.random.uniform(k1, (1, n), jnp.float32, 0.5, 1.5)
        beta = jax.random.uniform(k2, (1, n), jnp.float32, -0.2, 0.2)
        mean = jax.random.normal(k3, (1, n), jnp.float32) * 0.1
        var = jax.random.uniform(k4, (1, n), jnp.float32, 0.5, 1.5)
        return jnp.stack([gamma, beta, mean, var])

    sH = 1.0 / jnp.sqrt(H)
    in_alpha = H + 2 * D
    pred_rows = D + di + dc + dn + dq
    # Match the nn.Linear(2*combined_dim, output_dim) spec of the module.
    assert pred_rows == 2 * D, "item+cat+con+qlt dims must sum to combined_dim"
    params = {
        # GRU: gate order (r, z, n); stored pre-transposed so kernel does x @ W
        "w_ih": u(ks[0], (3, D, H), sH),
        "w_hh": u(ks[1], (3, H, H), sH),
        "b_ih": u(ks[2], (3, 1, H), sH),
        "b_hh": u(ks[3], (3, 1, H), sH),
        # mlp_alpha
        "wa1": u(ks[4], (in_alpha, H), 1.0 / jnp.sqrt(in_alpha)),
        "ba1": u(ks[5], (1, H), 1.0 / jnp.sqrt(in_alpha)),
        "bn1": bn_params(ks[6], H),
        "wa2": u(ks[7], (H, 1), sH),
        "ba2": u(ks[8], (1, 1), sH),
        # mlp_pred
        "wp1": u(ks[9], (pred_rows, O), 1.0 / jnp.sqrt(pred_rows)),
        "bp1": u(ks[10], (1, O), 1.0 / jnp.sqrt(pred_rows)),
        "bn2": bn_params(ks[11], O),
        "wp2": u(ks[12], (O, O), 1.0 / jnp.sqrt(O)),
        "bp2": u(ks[13], (1, O), 1.0 / jnp.sqrt(O)),
    }
    return params


def _make_inputs(key, B, T, D, di, dc, dn, dq):
    kx, kzl, kzs, ki, kc, kn, kq = jax.random.split(key, 7)
    return (jax.random.normal(kx, (B, T, D), jnp.float32),
            jax.random.normal(kzl, (B, D), jnp.float32),
            jax.random.normal(kzs, (B, D), jnp.float32),
            jax.random.normal(ki, (B, di), jnp.float32),
            jax.random.normal(kc, (B, dc), jnp.float32),
            jax.random.normal(kn, (B, dn), jnp.float32),
            jax.random.normal(kq, (B, dq), jnp.float32))


if __name__ == "__main__":
    # combined_dim = 32 = item(8) + cat(8) + con(8) + qlt(8); hidden_dim = 32; output_dim = 16
    T, D, H, O = 8, 32, 32, 16
    di = dc = dn = dq = 8

    key = jax.random.PRNGKey(0)
    kin1, kin2, kp = jax.random.split(key, 3)
    params = make_params(kp, D, H, O, di, dc, dn, dq)

    # Case 1: small batch (single grid step).
    B1 = 8
    ins1 = _make_inputs(kin1, B1, T, D, di, dc, dn, dq)
    y1 = jax.block_until_ready(interest_fusion_forward(params, *ins1))
    y1_ref = reference_forward(params, *ins1)
    assert y1.shape == (B1, O)
    assert jnp.max(jnp.abs(y1 - y1_ref)) < 5e-4, "kernel/reference mismatch (B=8)"

    # Case 2: non-divisible batch -> exercises zero-padding and a 2-step parallel grid.
    B2 = 20
    ins2 = _make_inputs(kin2, B2, T, D, di, dc, dn, dq)
    y2 = jax.block_until_ready(interest_fusion_forward(params, *ins2))
    y2_ref = reference_forward(params, *ins2)
    assert y2.shape == (B2, O)
    assert jnp.max(jnp.abs(y2 - y2_ref)) < 5e-4, "kernel/reference mismatch (B=20)"

    print("KERNEL_OK")
</pallas_src>

<mosaic_0001>
module attributes {stable_mosaic.version = 11 : i64} {
  func.func @fusion_kernel(%arg0: i32, %arg1: memref<8x8x32xf32, #tpu.memory_space<vmem>>, %arg2: memref<8x64xf32, #tpu.memory_space<vmem>>, %arg3: memref<8x32xf32, #tpu.memory_space<vmem>>, %arg4: memref<32x96xf32, #tpu.memory_space<vmem>>, %arg5: memref<32x96xf32, #tpu.memory_space<vmem>>, %arg6: memref<96x32xf32, #tpu.memory_space<vmem>>, %arg7: memref<64x16xf32, #tpu.memory_space<vmem>>, %arg8: memref<16x128xf32, #tpu.memory_space<vmem>>, %arg9: memref<8x128xf32, #tpu.memory_space<vmem>>, %arg10: memref<8x128xf32, #tpu.memory_space<vmem>>) attributes {dimension_semantics = [#tpu.dimension_semantics<parallel>], iteration_bounds = array<i64: 1>, scalar_prefetch = 0 : i64, scratch_operands = 0 : i64, tpu.core_type = #tpu.core_type<tc>, window_params = [{transform_indices = @transform_0, window_bounds = array<i64: 8, 8, 32>}, {transform_indices = @transform_1, window_bounds = array<i64: 8, 64>}, {transform_indices = @transform_2, window_bounds = array<i64: 8, 32>}, {pipeline_mode = #tpu.pipeline_mode<synchronous>, transform_indices = @transform_3, window_bounds = array<i64: 32, 96>}, {pipeline_mode = #tpu.pipeline_mode<synchronous>, transform_indices = @transform_4, window_bounds = array<i64: 32, 96>}, {pipeline_mode = #tpu.pipeline_mode<synchronous>, transform_indices = @transform_5, window_bounds = array<i64: 96, 32>}, {pipeline_mode = #tpu.pipeline_mode<synchronous>, transform_indices = @transform_6, window_bounds = array<i64: 64, 16>}, {pipeline_mode = #tpu.pipeline_mode<synchronous>, transform_indices = @transform_7, window_bounds = array<i64: 16, 128>}, {pipeline_mode = #tpu.pipeline_mode<synchronous>, transform_indices = @transform_8, window_bounds = array<i64: 8, 128>}, {transform_indices = @transform_9, window_bounds = array<i64: 8, 128>}]} {
    %c0 = arith.constant 0 : index
    %c0_0 = arith.constant 0 : index
    %0 = vector.load %arg9[%c0, %c0_0] : memref<8x128xf32, #tpu.memory_space<vmem>>, vector<1x96xf32>
    %c1 = arith.constant 1 : index
    %c0_1 = arith.constant 0 : index
    %1 = vector.load %arg9[%c1, %c0_1] : memref<8x128xf32, #tpu.memory_space<vmem>>, vector<1x96xf32>
    %c2 = arith.constant 2 : index
    %c0_2 = arith.constant 0 : index
    %2 = vector.load %arg9[%c2, %c0_2] : memref<8x128xf32, #tpu.memory_space<vmem>>, vector<1x32xf32>
    %c3 = arith.constant 3 : index
    %c0_3 = arith.constant 0 : index
    %3 = vector.load %arg9[%c3, %c0_3] : memref<8x128xf32, #tpu.memory_space<vmem>>, vector<1x32xf32>
    %c4 = arith.constant 4 : index
    %c0_4 = arith.constant 0 : index
    %4 = vector.load %arg9[%c4, %c0_4] : memref<8x128xf32, #tpu.memory_space<vmem>>, vector<1x1xf32>
    %c5 = arith.constant 5 : index
    %c0_5 = arith.constant 0 : index
    %5 = vector.load %arg9[%c5, %c0_5] : memref<8x128xf32, #tpu.memory_space<vmem>>, vector<1x16xf32>
    %c6 = arith.constant 6 : index
    %c0_6 = arith.constant 0 : index
    %6 = vector.load %arg9[%c6, %c0_6] : memref<8x128xf32, #tpu.memory_space<vmem>>, vector<1x128xf32>
    %c0_7 = arith.constant 0 : index
    %c0_8 = arith.constant 0 : index
    %c0_9 = arith.constant 0 : index
    %7 = vector.load %arg1[%c0_7, %c0_8, %c0_9] : memref<8x8x32xf32, #tpu.memory_space<vmem>>, vector<8x8x32xf32>
    %8 = vector.shape_cast %7 : vector<8x8x32xf32> to vector<64x32xf32>
    %c0_10 = arith.constant 0 : index
    %c0_11 = arith.constant 0 : index
    %9 = vector.load %arg4[%c0_10, %c0_11] : memref<32x96xf32, #tpu.memory_space<vmem>>, vector<32x96xf32>
    %cst = arith.constant dense<0.000000e+00> : vector<64x96xf32>
    %10 = tpu.matmul %8, %9, %cst {dimension_numbers = #tpu.dot_dimension_numbers<[1], [0], [0], [1], [0, 0, 1, 1], [], []>} : vector<64x32xf32>, vector<32x96xf32>, vector<64x96xf32> -> vector<64x96xf32>
    %11 = vector.broadcast %0 : vector<1x96xf32> to vector<64x96xf32>
    %12 = arith.addf %10, %11 : vector<64x96xf32>
    %13 = vector.shape_cast %12 : vector<64x96xf32> to vector<8x8x96xf32>
    %c0_12 = arith.constant 0 : index
    %c0_13 = arith.constant 0 : index
    %14 = vector.load %arg5[%c0_12, %c0_13] : memref<32x96xf32, #tpu.memory_space<vmem>>, vector<32x96xf32>
    %cst_14 = arith.constant 0.000000e+00 : f32
    %15 = vector.broadcast %cst_14 : f32 to vector<8x32xf32>
    %16 = vector.extract_strided_slice %13 {offsets = [0, 0, 0], sizes = [1, 8, 96], strides = [1, 1, 1]} : vector<8x8x96xf32> to vector<1x8x96xf32>
    %17 = vector.shape_cast %16 : vector<1x8x96xf32> to vector<8x96xf32>
    %cst_15 = arith.constant dense<0.000000e+00> : vector<8x96xf32>
    %18 = tpu.matmul %15, %14, %cst_15 {dimension_numbers = #tpu.dot_dimension_numbers<[1], [0], [0], [1], [0, 0, 1, 1], [], []>} : vector<8x32xf32>, vector<32x96xf32>, vector<8x96xf32> -> vector<8x96xf32>
    %19 = vector.broadcast %1 : vector<1x96xf32> to vector<8x96xf32>
    %20 = arith.addf %18, %19 : vector<8x96xf32>
    %21 = vector.extract_strided_slice %17 {offsets = [0, 0], sizes = [8, 64], strides = [1, 1]} : vector<8x96xf32> to vector<8x64xf32>
    %22 = vector.extract_strided_slice %20 {offsets = [0, 0], sizes = [8, 64], strides = [1, 1]} : vector<8x96xf32> to vector<8x64xf32>
    %23 = arith.addf %21, %22 : vector<8x64xf32>
    %24 = arith.negf %23 : vector<8x64xf32>
    %25 = math.exp %24 : vector<8x64xf32>
    %cst_16 = arith.constant 1.000000e+00 : f32
    %26 = vector.broadcast %cst_16 : f32 to vector<8x64xf32>
    %27 = arith.addf %26, %25 : vector<8x64xf32>
    %28 = arith.divf %26, %27 : vector<8x64xf32>
    %29 = vector.extract_strided_slice %28 {offsets = [0, 0], sizes = [8, 32], strides = [1, 1]} : vector<8x64xf32> to vector<8x32xf32>
    %30 = vector.extract_strided_slice %28 {offsets = [0, 32], sizes = [8, 32], strides = [1, 1]} : vector<8x64xf32> to vector<8x32xf32>
    %31 = vector.extract_strided_slice %17 {offsets = [0, 64], sizes = [8, 32], strides = [1, 1]} : vector<8x96xf32> to vector<8x32xf32>
    %32 = vector.extract_strided_slice %20 {offsets = [0, 64], sizes = [8, 32], strides = [1, 1]} : vector<8x96xf32> to vector<8x32xf32>
    %33 = arith.mulf %29, %32 : vector<8x32xf32>
    %34 = arith.addf %31, %33 : vector<8x32xf32>
    %35 = math.tanh %34 : vector<8x32xf32>
    %36 = arith.subf %15, %35 : vector<8x32xf32>
    %37 = arith.mulf %30, %36 : vector<8x32xf32>
    %38 = arith.addf %35, %37 : vector<8x32xf32>
    %39 = vector.extract_strided_slice %13 {offsets = [1, 0, 0], sizes = [1, 8, 96], strides = [1, 1, 1]} : vector<8x8x96xf32> to vector<1x8x96xf32>
    %40 = vector.shape_cast %39 : vector<1x8x96xf32> to vector<8x96xf32>
    %cst_17 = arith.constant dense<0.000000e+00> : vector<8x96xf32>
    %41 = tpu.matmul %38, %14, %cst_17 {dimension_numbers = #tpu.dot_dimension_numbers<[1], [0], [0], [1], [0, 0, 1, 1], [], []>} : vector<8x32xf32>, vector<32x96xf32>, vector<8x96xf32> -> vector<8x96xf32>
    %42 = vector.broadcast %1 : vector<1x96xf32> to vector<8x96xf32>
    %43 = arith.addf %41, %42 : vector<8x96xf32>
    %44 = vector.extract_strided_slice %40 {offsets = [0, 0], sizes = [8, 64], strides = [1, 1]} : vector<8x96xf32> to vector<8x64xf32>
    %45 = vector.extract_strided_slice %43 {offsets = [0, 0], sizes = [8, 64], strides = [1, 1]} : vector<8x96xf32> to vector<8x64xf32>
    %46 = arith.addf %44, %45 : vector<8x64xf32>
    %47 = arith.negf %46 : vector<8x64xf32>
    %48 = math.exp %47 : vector<8x64xf32>
    %cst_18 = arith.constant 1.000000e+00 : f32
    %49 = vector.broadcast %cst_18 : f32 to vector<8x64xf32>
    %50 = arith.addf %49, %48 : vector<8x64xf32>
    %51 = arith.divf %49, %50 : vector<8x64xf32>
    %52 = vector.extract_strided_slice %51 {offsets = [0, 0], sizes = [8, 32], strides = [1, 1]} : vector<8x64xf32> to vector<8x32xf32>
    %53 = vector.extract_strided_slice %51 {offsets = [0, 32], sizes = [8, 32], strides = [1, 1]} : vector<8x64xf32> to vector<8x32xf32>
    %54 = vector.extract_strided_slice %40 {offsets = [0, 64], sizes = [8, 32], strides = [1, 1]} : vector<8x96xf32> to vector<8x32xf32>
    %55 = vector.extract_strided_slice %43 {offsets = [0, 64], sizes = [8, 32], strides = [1, 1]} : vector<8x96xf32> to vector<8x32xf32>
    %56 = arith.mulf %52, %55 : vector<8x32xf32>
    %57 = arith.addf %54, %56 : vector<8x32xf32>
    %58 = math.tanh %57 : vector<8x32xf32>
    %59 = arith.subf %38, %58 : vector<8x32xf32>
    %60 = arith.mulf %53, %59 : vector<8x32xf32>
    %61 = arith.addf %58, %60 : vector<8x32xf32>
    %62 = vector.extract_strided_slice %13 {offsets = [2, 0, 0], sizes = [1, 8, 96], strides = [1, 1, 1]} : vector<8x8x96xf32> to vector<1x8x96xf32>
    %63 = vector.shape_cast %62 : vector<1x8x96xf32> to vector<8x96xf32>
    %cst_19 = arith.constant dense<0.000000e+00> : vector<8x96xf32>
    %64 = tpu.matmul %61, %14, %cst_19 {dimension_numbers = #tpu.dot_dimension_numbers<[1], [0], [0], [1], [0, 0, 1, 1], [], []>} : vector<8x32xf32>, vector<32x96xf32>, vector<8x96xf32> -> vector<8x96xf32>
    %65 = vector.broadcast %1 : vector<1x96xf32> to vector<8x96xf32>
    %66 = arith.addf %64, %65 : vector<8x96xf32>
    %67 = vector.extract_strided_slice %63 {offsets = [0, 0], sizes = [8, 64], strides = [1, 1]} : vector<8x96xf32> to vector<8x64xf32>
    %68 = vector.extract_strided_slice %66 {offsets = [0, 0], sizes = [8, 64], strides = [1, 1]} : vector<8x96xf32> to vector<8x64xf32>
    %69 = arith.addf %67, %68 : vector<8x64xf32>
    %70 = arith.negf %69 : vector<8x64xf32>
    %71 = math.exp %70 : vector<8x64xf32>
    %cst_20 = arith.constant 1.000000e+00 : f32
    %72 = vector.broadcast %cst_20 : f32 to vector<8x64xf32>
    %73 = arith.addf %72, %71 : vector<8x64xf32>
    %74 = arith.divf %72, %73 : vector<8x64xf32>
    %75 = vector.extract_strided_slice %74 {offsets = [0, 0], sizes = [8, 32], strides = [1, 1]} : vector<8x64xf32> to vector<8x32xf32>
    %76 = vector.extract_strided_slice %74 {offsets = [0, 32], sizes = [8, 32], strides = [1, 1]} : vector<8x64xf32> to vector<8x32xf32>
    %77 = vector.extract_strided_slice %63 {offsets = [0, 64], sizes = [8, 32], strides = [1, 1]} : vector<8x96xf32> to vector<8x32xf32>
    %78 = vector.extract_strided_slice %66 {offsets = [0, 64], sizes = [8, 32], strides = [1, 1]} : vector<8x96xf32> to vector<8x32xf32>
    %79 = arith.mulf %75, %78 : vector<8x32xf32>
    %80 = arith.addf %77, %79 : vector<8x32xf32>
    %81 = math.tanh %80 : vector<8x32xf32>
    %82 = arith.subf %61, %81 : vector<8x32xf32>
    %83 = arith.mulf %76, %82 : vector<8x32xf32>
    %84 = arith.addf %81, %83 : vector<8x32xf32>
    %85 = vector.extract_strided_slice %13 {offsets = [3, 0, 0], sizes = [1, 8, 96], strides = [1, 1, 1]} : vector<8x8x96xf32> to vector<1x8x96xf32>
    %86 = vector.shape_cast %85 : vector<1x8x96xf32> to vector<8x96xf32>
    %cst_21 = arith.constant dense<0.000000e+00> : vector<8x96xf32>
    %87 = tpu.matmul %84, %14, %cst_21 {dimension_numbers = #tpu.dot_dimension_numbers<[1], [0], [0], [1], [0, 0, 1, 1], [], []>} : vector<8x32xf32>, vector<32x96xf32>, vector<8x96xf32> -> vector<8x96xf32>
    %88 = vector.broadcast %1 : vector<1x96xf32> to vector<8x96xf32>
    %89 = arith.addf %87, %88 : vector<8x96xf32>
    %90 = vector.extract_strided_slice %86 {offsets = [0, 0], sizes = [8, 64], strides = [1, 1]} : vector<8x96xf32> to vector<8x64xf32>
    %91 = vector.extract_strided_slice %89 {offsets = [0, 0], sizes = [8, 64], strides = [1, 1]} : vector<8x96xf32> to vector<8x64xf32>
    %92 = arith.addf %90, %91 : vector<8x64xf32>
    %93 = arith.negf %92 : vector<8x64xf32>
    %94 = math.exp %93 : vector<8x64xf32>
    %cst_22 = arith.constant 1.000000e+00 : f32
    %95 = vector.broadcast %cst_22 : f32 to vector<8x64xf32>
    %96 = arith.addf %95, %94 : vector<8x64xf32>
    %97 = arith.divf %95, %96 : vector<8x64xf32>
    %98 = vector.extract_strided_slice %97 {offsets = [0, 0], sizes = [8, 32], strides = [1, 1]} : vector<8x64xf32> to vector<8x32xf32>
    %99 = vector.extract_strided_slice %97 {offsets = [0, 32], sizes = [8, 32], strides = [1, 1]} : vector<8x64xf32> to vector<8x32xf32>
    %100 = vector.extract_strided_slice %86 {offsets = [0, 64], sizes = [8, 32], strides = [1, 1]} : vector<8x96xf32> to vector<8x32xf32>
    %101 = vector.extract_strided_slice %89 {offsets = [0, 64], sizes = [8, 32], strides = [1, 1]} : vector<8x96xf32> to vector<8x32xf32>
    %102 = arith.mulf %98, %101 : vector<8x32xf32>
    %103 = arith.addf %100, %102 : vector<8x32xf32>
    %104 = math.tanh %103 : vector<8x32xf32>
    %105 = arith.subf %84, %104 : vector<8x32xf32>
    %106 = arith.mulf %99, %105 : vector<8x32xf32>
    %107 = arith.addf %104, %106 : vector<8x32xf32>
    %108 = vector.extract_strided_slice %13 {offsets = [4, 0, 0], sizes = [1, 8, 96], strides = [1, 1, 1]} : vector<8x8x96xf32> to vector<1x8x96xf32>
    %109 = vector.shape_cast %108 : vector<1x8x96xf32> to vector<8x96xf32>
    %cst_23 = arith.constant dense<0.000000e+00> : vector<8x96xf32>
    %110 = tpu.matmul %107, %14, %cst_23 {dimension_numbers = #tpu.dot_dimension_numbers<[1], [0], [0], [1], [0, 0, 1, 1], [], []>} : vector<8x32xf32>, vector<32x96xf32>, vector<8x96xf32> -> vector<8x96xf32>
    %111 = vector.broadcast %1 : vector<1x96xf32> to vector<8x96xf32>
    %112 = arith.addf %110, %111 : vector<8x96xf32>
    %113 = vector.extract_strided_slice %109 {offsets = [0, 0], sizes = [8, 64], strides = [1, 1]} : vector<8x96xf32> to vector<8x64xf32>
    %114 = vector.extract_strided_slice %112 {offsets = [0, 0], sizes = [8, 64], strides = [1, 1]} : vector<8x96xf32> to vector<8x64xf32>
    %115 = arith.addf %113, %114 : vector<8x64xf32>
    %116 = arith.negf %115 : vector<8x64xf32>
    %117 = math.exp %116 : vector<8x64xf32>
    %cst_24 = arith.constant 1.000000e+00 : f32
    %118 = vector.broadcast %cst_24 : f32 to vector<8x64xf32>
    %119 = arith.addf %118, %117 : vector<8x64xf32>
    %120 = arith.divf %118, %119 : vector<8x64xf32>
    %121 = vector.extract_strided_slice %120 {offsets = [0, 0], sizes = [8, 32], strides = [1, 1]} : vector<8x64xf32> to vector<8x32xf32>
    %122 = vector.extract_strided_slice %120 {offsets = [0, 32], sizes = [8, 32], strides = [1, 1]} : vector<8x64xf32> to vector<8x32xf32>
    %123 = vector.extract_strided_slice %109 {offsets = [0, 64], sizes = [8, 32], strides = [1, 1]} : vector<8x96xf32> to vector<8x32xf32>
    %124 = vector.extract_strided_slice %112 {offsets = [0, 64], sizes = [8, 32], strides = [1, 1]} : vector<8x96xf32> to vector<8x32xf32>
    %125 = arith.mulf %121, %124 : vector<8x32xf32>
    %126 = arith.addf %123, %125 : vector<8x32xf32>
    %127 = math.tanh %126 : vector<8x32xf32>
    %128 = arith.subf %107, %127 : vector<8x32xf32>
    %129 = arith.mulf %122, %128 : vector<8x32xf32>
    %130 = arith.addf %127, %129 : vector<8x32xf32>
    %131 = vector.extract_strided_slice %13 {offsets = [5, 0, 0], sizes = [1, 8, 96], strides = [1, 1, 1]} : vector<8x8x96xf32> to vector<1x8x96xf32>
    %132 = vector.shape_cast %131 : vector<1x8x96xf32> to vector<8x96xf32>
    %cst_25 = arith.constant dense<0.000000e+00> : vector<8x96xf32>
    %133 = tpu.matmul %130, %14, %cst_25 {dimension_numbers = #tpu.dot_dimension_numbers<[1], [0], [0], [1], [0, 0, 1, 1], [], []>} : vector<8x32xf32>, vector<32x96xf32>, vector<8x96xf32> -> vector<8x96xf32>
    %134 = vector.broadcast %1 : vector<1x96xf32> to vector<8x96xf32>
    %135 = arith.addf %133, %134 : vector<8x96xf32>
    %136 = vector.extract_strided_slice %132 {offsets = [0, 0], sizes = [8, 64], strides = [1, 1]} : vector<8x96xf32> to vector<8x64xf32>
    %137 = vector.extract_strided_slice %135 {offsets = [0, 0], sizes = [8, 64], strides = [1, 1]} : vector<8x96xf32> to vector<8x64xf32>
    %138 = arith.addf %136, %137 : vector<8x64xf32>
    %139 = arith.negf %138 : vector<8x64xf32>
    %140 = math.exp %139 : vector<8x64xf32>
    %cst_26 = arith.constant 1.000000e+00 : f32
    %141 = vector.broadcast %cst_26 : f32 to vector<8x64xf32>
    %142 = arith.addf %141, %140 : vector<8x64xf32>
    %143 = arith.divf %141, %142 : vector<8x64xf32>
    %144 = vector.extract_strided_slice %143 {offsets = [0, 0], sizes = [8, 32], strides = [1, 1]} : vector<8x64xf32> to vector<8x32xf32>
    %145 = vector.extract_strided_slice %143 {offsets = [0, 32], sizes = [8, 32], strides = [1, 1]} : vector<8x64xf32> to vector<8x32xf32>
    %146 = vector.extract_strided_slice %132 {offsets = [0, 64], sizes = [8, 32], strides = [1, 1]} : vector<8x96xf32> to vector<8x32xf32>
    %147 = vector.extract_strided_slice %135 {offsets = [0, 64], sizes = [8, 32], strides = [1, 1]} : vector<8x96xf32> to vector<8x32xf32>
    %148 = arith.mulf %144, %147 : vector<8x32xf32>
    %149 = arith.addf %146, %148 : vector<8x32xf32>
    %150 = math.tanh %149 : vector<8x32xf32>
    %151 = arith.subf %130, %150 : vector<8x32xf32>
    %152 = arith.mulf %145, %151 : vector<8x32xf32>
    %153 = arith.addf %150, %152 : vector<8x32xf32>
    %154 = vector.extract_strided_slice %13 {offsets = [6, 0, 0], sizes = [1, 8, 96], strides = [1, 1, 1]} : vector<8x8x96xf32> to vector<1x8x96xf32>
    %155 = vector.shape_cast %154 : vector<1x8x96xf32> to vector<8x96xf32>
    %cst_27 = arith.constant dense<0.000000e+00> : vector<8x96xf32>
    %156 = tpu.matmul %153, %14, %cst_27 {dimension_numbers = #tpu.dot_dimension_numbers<[1], [0], [0], [1], [0, 0, 1, 1], [], []>} : vector<8x32xf32>, vector<32x96xf32>, vector<8x96xf32> -> vector<8x96xf32>
    %157 = vector.broadcast %1 : vector<1x96xf32> to vector<8x96xf32>
    %158 = arith.addf %156, %157 : vector<8x96xf32>
    %159 = vector.extract_strided_slice %155 {offsets = [0, 0], sizes = [8, 64], strides = [1, 1]} : vector<8x96xf32> to vector<8x64xf32>
    %160 = vector.extract_strided_slice %158 {offsets = [0, 0], sizes = [8, 64], strides = [1, 1]} : vector<8x96xf32> to vector<8x64xf32>
    %161 = arith.addf %159, %160 : vector<8x64xf32>
    %162 = arith.negf %161 : vector<8x64xf32>
    %163 = math.exp %162 : vector<8x64xf32>
    %cst_28 = arith.constant 1.000000e+00 : f32
    %164 = vector.broadcast %cst_28 : f32 to vector<8x64xf32>
    %165 = arith.addf %164, %163 : vector<8x64xf32>
    %166 = arith.divf %164, %165 : vector<8x64xf32>
    %167 = vector.extract_strided_slice %166 {offsets = [0, 0], sizes = [8, 32], strides = [1, 1]} : vector<8x64xf32> to vector<8x32xf32>
    %168 = vector.extract_strided_slice %166 {offsets = [0, 32], sizes = [8, 32], strides = [1, 1]} : vector<8x64xf32> to vector<8x32xf32>
    %169 = vector.extract_strided_slice %155 {offsets = [0, 64], sizes = [8, 32], strides = [1, 1]} : vector<8x96xf32> to vector<8x32xf32>
    %170 = vector.extract_strided_slice %158 {offsets = [0, 64], sizes = [8, 32], strides = [1, 1]} : vector<8x96xf32> to vector<8x32xf32>
    %171 = arith.mulf %167, %170 : vector<8x32xf32>
    %172 = arith.addf %169, %171 : vector<8x32xf32>
    %173 = math.tanh %172 : vector<8x32xf32>
    %174 = arith.subf %153, %173 : vector<8x32xf32>
    %175 = arith.mulf %168, %174 : vector<8x32xf32>
    %176 = arith.addf %173, %175 : vector<8x32xf32>
    %177 = vector.extract_strided_slice %13 {offsets = [7, 0, 0], sizes = [1, 8, 96], strides = [1, 1, 1]} : vector<8x8x96xf32> to vector<1x8x96xf32>
    %178 = vector.shape_cast %177 : vector<1x8x96xf32> to vector<8x96xf32>
    %cst_29 = arith.constant dense<0.000000e+00> : vector<8x96xf32>
    %179 = tpu.matmul %176, %14, %cst_29 {dimension_numbers = #tpu.dot_dimension_numbers<[1], [0], [0], [1], [0, 0, 1, 1], [], []>} : vector<8x32xf32>, vector<32x96xf32>, vector<8x96xf32> -> vector<8x96xf32>
    %180 = vector.broadcast %1 : vector<1x96xf32> to vector<8x96xf32>
    %181 = arith.addf %179, %180 : vector<8x96xf32>
    %182 = vector.extract_strided_slice %178 {offsets = [0, 0], sizes = [8, 64], strides = [1, 1]} : vector<8x96xf32> to vector<8x64xf32>
    %183 = vector.extract_strided_slice %181 {offsets = [0, 0], sizes = [8, 64], strides = [1, 1]} : vector<8x96xf32> to vector<8x64xf32>
    %184 = arith.addf %182, %183 : vector<8x64xf32>
    %185 = arith.negf %184 : vector<8x64xf32>
    %186 = math.exp %185 : vector<8x64xf32>
    %cst_30 = arith.constant 1.000000e+00 : f32
    %187 = vector.broadcast %cst_30 : f32 to vector<8x64xf32>
    %188 = arith.addf %187, %186 : vector<8x64xf32>
    %189 = arith.divf %187, %188 : vector<8x64xf32>
    %190 = vector.extract_strided_slice %189 {offsets = [0, 0], sizes = [8, 32], strides = [1, 1]} : vector<8x64xf32> to vector<8x32xf32>
    %191 = vector.extract_strided_slice %189 {offsets = [0, 32], sizes = [8, 32], strides = [1, 1]} : vector<8x64xf32> to vector<8x32xf32>
    %192 = vector.extract_strided_slice %178 {offsets = [0, 64], sizes = [8, 32], strides = [1, 1]} : vector<8x96xf32> to vector<8x32xf32>
    %193 = vector.extract_strided_slice %181 {offsets = [0, 64], sizes = [8, 32], strides = [1, 1]} : vector<8x96xf32> to vector<8x32xf32>
    %194 = arith.mulf %190, %193 : vector<8x32xf32>
    %195 = arith.addf %192, %194 : vector<8x32xf32>
    %196 = math.tanh %195 : vector<8x32xf32>
    %197 = arith.subf %176, %196 : vector<8x32xf32>
    %198 = arith.mulf %191, %197 : vector<8x32xf32>
    %199 = arith.addf %196, %198 : vector<8x32xf32>
    %c0_31 = arith.constant 0 : index
    %c0_32 = arith.constant 0 : index
    %200 = vector.load %arg2[%c0_31, %c0_32] : memref<8x64xf32, #tpu.memory_space<vmem>>, vector<8x64xf32>
    %c0_33 = arith.constant 0 : index
    %c0_34 = arith.constant 0 : index
    %201 = vector.load %arg6[%c0_33, %c0_34] : memref<96x32xf32, #tpu.memory_space<vmem>>, vector<96x32xf32>
    %202 = vector.extract_strided_slice %201 {offsets = [0, 0], sizes = [32, 32], strides = [1, 1]} : vector<96x32xf32> to vector<32x32xf32>
    %cst_35 = arith.constant dense<0.000000e+00> : vector<8x32xf32>
    %203 = tpu.matmul %199, %202, %cst_35 {dimension_numbers = #tpu.dot_dimension_numbers<[1], [0], [0], [1], [0, 0, 1, 1], [], []>} : vector<8x32xf32>, vector<32x32xf32>, vector<8x32xf32> -> vector<8x32xf32>
    %204 = vector.extract_strided_slice %201 {offsets = [32, 0], sizes = [64, 32], strides = [1, 1]} : vector<96x32xf32> to vector<64x32xf32>
    %cst_36 = arith.constant dense<0.000000e+00> : vector<8x32xf32>
    %205 = tpu.matmul %200, %204, %cst_36 {dimension_numbers = #tpu.dot_dimension_numbers<[1], [0], [0], [1], [0, 0, 1, 1], [], []>} : vector<8x64xf32>, vector<64x32xf32>, vector<8x32xf32> -> vector<8x32xf32>
    %206 = arith.addf %203, %205 : vector<8x32xf32>
    %207 = vector.broadcast %2 : vector<1x32xf32> to vector<8x32xf32>
    %208 = arith.addf %206, %207 : vector<8x32xf32>
    %cst_37 = arith.constant 0.000000e+00 : f32
    %209 = vector.broadcast %cst_37 : f32 to vector<8x32xf32>
    %210 = arith.maximumf %208, %209 : vector<8x32xf32>
    %211 = vector.broadcast %3 : vector<1x32xf32> to vector<8x32xf32>
    %212 = arith.mulf %210, %211 : vector<8x32xf32>
    %cst_38 = arith.constant dense<0.000000e+00> : vector<8xf32>
    %213 = vector.multi_reduction <add>, %212, %cst_38 [1] : vector<8x32xf32> to vector<8xf32>
    %214 = vector.shape_cast %213 : vector<8xf32> to vector<8x1xf32>
    %215 = vector.broadcast %4 : vector<1x1xf32> to vector<8x1xf32>
    %216 = arith.addf %214, %215 : vector<8x1xf32>
    %217 = arith.negf %216 : vector<8x1xf32>
    %218 = math.exp %217 : vector<8x1xf32>
    %cst_39 = arith.constant 1.000000e+00 : f32
    %219 = vector.broadcast %cst_39 : f32 to vector<8x1xf32>
    %220 = arith.addf %219, %218 : vector<8x1xf32>
    %221 = arith.divf %219, %220 : vector<8x1xf32>
    %222 = vector.extract_strided_slice %200 {offsets = [0, 0], sizes = [8, 32], strides = [1, 1]} : vector<8x64xf32> to vector<8x32xf32>
    %223 = vector.extract_strided_slice %200 {offsets = [0, 32], sizes = [8, 32], strides = [1, 1]} : vector<8x64xf32> to vector<8x32xf32>
    %224 = arith.subf %222, %223 : vector<8x32xf32>
    %225 = vector.broadcast %221 : vector<8x1xf32> to vector<8x32xf32>
    %226 = arith.mulf %225, %224 : vector<8x32xf32>
    %227 = arith.addf %223, %226 : vector<8x32xf32>
    %c0_40 = arith.constant 0 : index
    %c0_41 = arith.constant 0 : index
    %228 = vector.load %arg7[%c0_40, %c0_41] : memref<64x16xf32, #tpu.memory_space<vmem>>, vector<64x16xf32>
    %229 = vector.extract_strided_slice %228 {offsets = [0, 0], sizes = [32, 16], strides = [1, 1]} : vector<64x16xf32> to vector<32x16xf32>
    %cst_42 = arith.constant dense<0.000000e+00> : vector<8x16xf32>
    %230 = tpu.matmul %227, %229, %cst_42 {dimension_numbers = #tpu.dot_dimension_numbers<[1], [0], [0], [1], [0, 0, 1, 1], [], []>} : vector<8x32xf32>, vector<32x16xf32>, vector<8x16xf32> -> vector<8x16xf32>
    %c0_43 = arith.constant 0 : index
    %c0_44 = arith.constant 0 : index
    %231 = vector.load %arg3[%c0_43, %c0_44] : memref<8x32xf32, #tpu.memory_space<vmem>>, vector<8x32xf32>
    %232 = vector.extract_strided_slice %228 {offsets = [32, 0], sizes = [32, 16], strides = [1, 1]} : vector<64x16xf32> to vector<32x16xf32>
    %cst_45 = arith.constant dense<0.000000e+00> : vector<8x16xf32>
    %233 = tpu.matmul %231, %232, %cst_45 {dimension_numbers = #tpu.dot_dimension_numbers<[1], [0], [0], [1], [0, 0, 1, 1], [], []>} : vector<8x32xf32>, vector<32x16xf32>, vector<8x16xf32> -> vector<8x16xf32>
    %234 = arith.addf %230, %233 : vector<8x16xf32>
    %235 = vector.broadcast %5 : vector<1x16xf32> to vector<8x16xf32>
    %236 = arith.addf %234, %235 : vector<8x16xf32>
    %c0_46 = arith.constant 0 : index
    %c0_47 = arith.constant 0 : index
    %237 = vector.load %arg8[%c0_46, %c0_47] : memref<16x128xf32, #tpu.memory_space<vmem>>, vector<16x128xf32>
    %cst_48 = arith.constant dense<0.000000e+00> : vector<8x128xf32>
    %238 = tpu.matmul %236, %237, %cst_48 {dimension_numbers = #tpu.dot_dimension_numbers<[1], [0], [0], [1], [0, 0, 1, 1], [], []>} : vector<8x16xf32>, vector<16x128xf32>, vector<8x128xf32> -> vector<8x128xf32>
    %239 = vector.broadcast %6 : vector<1x128xf32> to vector<8x128xf32>
    %240 = arith.addf %238, %239 : vector<8x128xf32>
    %241 = arith.negf %240 : vector<8x128xf32>
    %242 = math.exp %241 : vector<8x128xf32>
    %cst_49 = arith.constant 1.000000e+00 : f32
    %243 = vector.broadcast %cst_49 : f32 to vector<8x128xf32>
    %244 = arith.addf %243, %242 : vector<8x128xf32>
    %245 = arith.divf %243, %244 : vector<8x128xf32>
    %c0_50 = arith.constant 0 : index
    %c0_51 = arith.constant 0 : index
    %246 = vector.load %arg10[%c0_50, %c0_51] : memref<8x128xf32, #tpu.memory_space<vmem>>, vector<8x128xf32>
    tpu.vector_store %arg10[%c0_50, %c0_51], %245 {strides = array<i32>} : memref<8x128xf32, #tpu.memory_space<vmem>>, vector<8x128xf32>,
    return
  }
  func.func @transform_0(%arg0: i32) -> (i32, i32, i32) {
    %c0_i32 = arith.constant 0 : i32
    %c0_i32_0 = arith.constant 0 : i32
    %c0_i32_1 = arith.constant 0 : i32
    return %c0_i32, %arg0, %c0_i32_0 : i32, i32, i32
  }
  func.func @transform_1(%arg0: i32) -> (i32, i32) {
    %c0_i32 = arith.constant 0 : i32
    %c0_i32_0 = arith.constant 0 : i32
    return %arg0, %c0_i32 : i32, i32
  }
  func.func @transform_2(%arg0: i32) -> (i32, i32) {
    %c0_i32 = arith.constant 0 : i32
    %c0_i32_0 = arith.constant 0 : i32
    return %arg0, %c0_i32 : i32, i32
  }
  func.func @transform_3(%arg0: i32) -> (i32, i32) {
    %c0_i32 = arith.constant 0 : i32
    %c0_i32_0 = arith.constant 0 : i32
    %c0_i32_1 = arith.constant 0 : i32
    return %c0_i32, %c0_i32_0 : i32, i32
  }
  func.func @transform_4(%arg0: i32) -> (i32, i32) {
    %c0_i32 = arith.constant 0 : i32
    %c0_i32_0 = arith.constant 0 : i32
    %c0_i32_1 = arith.constant 0 : i32
    return %c0_i32, %c0_i32_0 : i32, i32
  }
  func.func @transform_5(%arg0: i32) -> (i32, i32) {
    %c0_i32 = arith.constant 0 : i32
    %c0_i32_0 = arith.constant 0 : i32
    %c0_i32_1 = arith.constant 0 : i32
    return %c0_i32, %c0_i32_0 : i32, i32
  }
  func.func @transform_6(%arg0: i32) -> (i32, i32) {
    %c0_i32 = arith.constant 0 : i32
    %c0_i32_0 = arith.constant 0 : i32
    %c0_i32_1 = arith.constant 0 : i32
    return %c0_i32, %c0_i32_0 : i32, i32
  }
  func.func @transform_7(%arg0: i32) -> (i32, i32) {
    %c0_i32 = arith.constant 0 : i32
    %c0_i32_0 = arith.constant 0 : i32
    %c0_i32_1 = arith.constant 0 : i32
    return %c0_i32, %c0_i32_0 : i32, i32
  }
  func.func @transform_8(%arg0: i32) -> (i32, i32) {
    %c0_i32 = arith.constant 0 : i32
    %c0_i32_0 = arith.constant 0 : i32
    %c0_i32_1 = arith.constant 0 : i32
    return %c0_i32, %c0_i32_0 : i32, i32
  }
  func.func @transform_9(%arg0: i32) -> (i32, i32) {
    %c0_i32 = arith.constant 0 : i32
    %c0_i32_0 = arith.constant 0 : i32
    return %arg0, %c0_i32 : i32, i32
  }
}

</mosaic_0001>

<llo_original>
// kernel: tpu_custom_call.1
$region0: #{tpu_custom_call.1}
  #allocation0 [shape = 'u32[]', space=smem, size = 0x4, offset = 0x4, fixed_abs, tag = 'smem constant byte address 0x4 - core index']
  #allocation1 [shape = 'u32[144,128]{1,0:T(1,128)}', space=vmem, size = 0x12000, scoped, tag = 'internal scratch']
  %s0 = inlined_call_operand.vmem [shape: f32[8,8,32], index: 0, kind: input, shape index: {}]
  %s1 = inlined_call_operand.vmem [shape: f32[8,64], index: 1, kind: input, shape index: {}]
  %s2 = inlined_call_operand.vmem [shape: f32[8,32], index: 2, kind: input, shape index: {}]
  %s3 = inlined_call_operand.vmem [shape: f32[32,96], index: 3, kind: input, shape index: {}]
  %s4 = inlined_call_operand.vmem [shape: f32[32,96], index: 4, kind: input, shape index: {}]
  %s5 = inlined_call_operand.vmem [shape: f32[96,32], index: 5, kind: input, shape index: {}]
  %s6 = inlined_call_operand.vmem [shape: f32[64,16], index: 6, kind: input, shape index: {}]
  %s7 = inlined_call_operand.vmem [shape: f32[16,128], index: 7, kind: input, shape index: {}]
  %s8 = inlined_call_operand.vmem [shape: f32[8,128], index: 8, kind: input, shape index: {}]
  %s9 = inlined_call_operand.hbm [shape: f32[8,128], index: 9, kind: output, shape index: {}]
  %s10 = sld [smem:[#allocation0]]
  $region46: #{tpu_custom_call.1} parent=0
    _
  %s12 = ssub.s32 1, %s10
  %s13 = scalar_select 0, %s12, %s10
  $region1: #{tpu_custom_call.1} parent=0
    #allocation2 [shape = 'u8[4096]{0}', space=vmem, size = 0x1000, scoped, tag = 'output window, operand 0, single buffered']
    #allocation3 [shape = 's32[1]{0}', space=sflag, size = 0x4, scoped, tag = 'scoped memory for tpu_custom_call.1']
    %14 = vsyncpa [#allocation3], 0
    // Predicated region
    $region2: #{tpu_custom_call.1} parent=1 // pred_check
      _
    $region3: #{tpu_custom_call.1} parent=1 // pred_check_branch
      %16 = sbr.rel (0) target = $region5
    $region4: #{tpu_custom_call.1} parent=1 // pred_region
      _
    $region5: #{tpu_custom_call.1} parent=1 // pred_fallthru
      _
    // Predicated region
    $region6: #{tpu_custom_call.1} parent=1 // pred_check
      _
    $region7: #{tpu_custom_call.1} parent=1 // pred_check_branch
      %18 = sbr.rel (0) target = $region9
    $region8: #{tpu_custom_call.1} parent=1 // pred_region
      _
    $region9: #{tpu_custom_call.1} parent=1 // pred_fallthru
      _
    // Predicated region
    $region10: #{tpu_custom_call.1} parent=1 // pred_check
      _
    $region11: #{tpu_custom_call.1} parent=1 // pred_check_branch
      %20 = sbr.rel (0) target = $region13
    $region12: #{tpu_custom_call.1} parent=1 // pred_region
      _
    $region13: #{tpu_custom_call.1} parent=1 // pred_fallthru
      _
    // Predicated region
    $region14: #{tpu_custom_call.1} parent=1 // pred_check
      _
    $region15: #{tpu_custom_call.1} parent=1 // pred_check_branch
      %22 = sbr.rel (0) target = $region17
    $region16: #{tpu_custom_call.1} parent=1 // pred_region
      _
    $region17: #{tpu_custom_call.1} parent=1 // pred_fallthru
      _
    // Predicated region
    $region18: #{tpu_custom_call.1} parent=1 // pred_check
      _
    $region19: #{tpu_custom_call.1} parent=1 // pred_check_branch
      %24 = sbr.rel (0) target = $region21
    $region20: #{tpu_custom_call.1} parent=1 // pred_region
      _
    $region21: #{tpu_custom_call.1} parent=1 // pred_fallthru
      _
    // Predicated region
    $region22: #{tpu_custom_call.1} parent=1 // pred_check
      _
    $region23: #{tpu_custom_call.1} parent=1 // pred_check_branch
      %26 = sbr.rel (0) target = $region25
    $region24: #{tpu_custom_call.1} parent=1 // pred_region
      _
    $region25: #{tpu_custom_call.1} parent=1 // pred_fallthru
      _
    // Predicated region
    $region26: #{tpu_custom_call.1} parent=1 // pred_check
      _
    $region27: #{tpu_custom_call.1} parent=1 // pred_check_branch
      %28 = sbr.rel (0) target = $region29
    $region28: #{tpu_custom_call.1} parent=1 // pred_region
      _
    $region29: #{tpu_custom_call.1} parent=1 // pred_fallthru
      _
    // Predicated region
    $region30: #{tpu_custom_call.1} parent=1 // pred_check
      _
    $region31: #{tpu_custom_call.1} parent=1 // pred_check_branch
      %30 = sbr.rel (0) target = $region33
    $region32: #{tpu_custom_call.1} parent=1 // pred_region
      _
    $region33: #{tpu_custom_call.1} parent=1 // pred_fallthru
      _
    // Predicated region
    $region34: #{tpu_custom_call.1} parent=1 // pred_check
      _
    $region35: #{tpu_custom_call.1} parent=1 // pred_check_branch
      %32 = sbr.rel (0) target = $region37
    $region36: #{tpu_custom_call.1} parent=1 // pred_region
      _
    $region37: #{tpu_custom_call.1} parent=1 // pred_fallthru
      _
    %v33 = vld [vmem:[%s8] sm:$0x1]
    %v34 = vld [vmem:[%s8 + $0x1] sm:$0x1]
    %v35 = vld [vmem:[%s8 + $0x2] sm:$0x1]
    %v36 = vld [vmem:[%s8 + $0x3] sm:$0x1]
    %v37 = vld [vmem:[%s8 + $0x4] sm:$0x1]
    %v38 = vld [vmem:[%s8 + $0x5] sm:$0x1]
    %v39 = vld [vmem:[%s8 + $0x6] sm:$0x1]
    %v40 = vld [vmem:[%s0] sm:$0xff]
    %v41 = vld [vmem:[%s0 + $0x8] sm:$0xff]
    %v42 = vld [vmem:[%s0 + $0x10] sm:$0xff]
    %v43 = vld [vmem:[%s0 + $0x18] sm:$0xff]
    %v44 = vld [vmem:[%s0 + $0x20] sm:$0xff]
    %v45 = vld [vmem:[%s0 + $0x28] sm:$0xff]
    %v46 = vld [vmem:[%s0 + $0x30] sm:$0xff]
    %v47 = vld [vmem:[%s0 + $0x38] sm:$0xff]
    %v48 = vld [vmem:[%s3] sm:$0xff]
    %v49 = vld [vmem:[%s3 + $0x8] sm:$0xff]
    %v50 = vld [vmem:[%s3 + $0x10] sm:$0xff]
    %v51 = vld [vmem:[%s3 + $0x18] sm:$0xff]
    %v52 = vlaneseq
    %v53 = vshrl.u32 %v52, 7
    %v54 = vsub.s32 0, %v53
    %v55 = vrot.slane %v33, %v54
    %vm56 = vcmask 261120
    %v58 = vsel %vm56, %v40, 0
    %v61 = vsel %vm56, %v41, 0
    %v64 = vsel %vm56, %v42, 0
    %v67 = vsel %vm56, %v43, 0
    %v70 = vsel %vm56, %v44, 0
    %v73 = vsel %vm56, %v45, 0
    %v76 = vsel %vm56, %v46, 0
    %v79 = vsel %vm56, %v47, 0
    %81 = vmatprep.subr.mxu0 0.0
    %82 = vmatpush1.msra.mxu0 %v48
    %83 = vmatprep.subr.mxu0 0.0
    %84 = vmatpush1.msra.mxu0 %v49
    %85 = vmatprep.subr.mxu0 0.0
    %86 = vmatpush1.msra.mxu0 %v50
    %87 = vmatprep.subr.mxu0 0.0
    %88 = vmatpush1.msra.mxu0 %v51
    %89 = vmatprep.subr.mxu0 0.0
    %90 = vmatpush1.msra.mxu0 0.0
    %91 = vmatprep.subr.mxu0 0.0
    %92 = vmatpush1.msra.mxu0 0.0
    %93 = vmatprep.subr.mxu0 0.0
    %94 = vmatpush1.msra.mxu0 0.0
    %95 = vmatprep.subr.mxu0 0.0
    %96 = vmatpush1.msra.mxu0 0.0
    %97 = vmatprep.subr.mxu0 0.0
    %98 = vmatpush1.msra.mxu0 0.0
    %99 = vmatprep.subr.mxu0 0.0
    %100 = vmatpush1.msra.mxu0 0.0
    %101 = vmatprep.subr.mxu0 0.0
    %102 = vmatpush1.msra.mxu0 0.0
    %103 = vmatprep.subr.mxu0 0.0
    %104 = vmatpush1.msra.mxu0 0.0
    %105 = vmatprep.subr.mxu0 0.0
    %106 = vmatpush1.msra.mxu0 0.0
    %107 = vmatprep.subr.mxu0 0.0
    %108 = vmatpush1.msra.mxu0 0.0
    %109 = vmatprep.subr.mxu0 0.0
    %110 = vmatpush1.msra.mxu0 0.0
    %111 = vmatprep.subr.mxu0 0.0
    %112 = vmatpush1.msra.mxu0 0.0
    %113 = vmatprep.subr.mxu0 0.0
    %114 = vmatpush1.msra.mxu0 0.0
    %115 = vmatprep.subr.mxu0 0.0
    %116 = vmatpush1.msra.mxu0 0.0
    %117 = vmatprep.subr.mxu0 0.0
    %118 = vmatpush1.msra.mxu0 0.0
    %119 = vmatprep.subr.mxu0 0.0
    %120 = vmatpush1.msra.mxu0 0.0
    %121 = vmatprep.subr.mxu0 0.0
    %122 = vmatpush1.msra.mxu0 0.0
    %123 = vmatprep.subr.mxu0 0.0
    %124 = vmatpush1.msra.mxu0 0.0
    %125 = vmatprep.subr.mxu0 0.0
    %126 = vmatpush1.msra.mxu0 0.0
    %127 = vmatprep.subr.mxu0 0.0
    %128 = vmatpush1.msra.mxu0 0.0
    %129 = vmatprep.subr.mxu0 0.0
    %130 = vmatpush1.msra.mxu0 0.0
    %131 = vmatprep.subr.mxu0 0.0
    %132 = vmatpush1.msra.mxu0 0.0
    %133 = vmatprep.subr.mxu0 0.0
    %134 = vmatpush1.msra.mxu0 0.0
    %135 = vmatprep.subr.mxu0 0.0
    %136 = vmatpush1.msra.mxu0 0.0
    %137 = vmatprep.subr.mxu0 0.0
    %138 = vmatpush1.msra.mxu0 0.0
    %139 = vmatprep.subr.mxu0 0.0
    %140 = vmatpush1.msra.mxu0 0.0
    %141 = vmatprep.subr.mxu0 0.0
    %142 = vmatpush1.msra.mxu0 0.0
    %143 = vmatprep.subr.mxu0 0.0
    %144 = vmatpush1.msra.mxu0 0.0
    %145 = vmatprep.mubr.f32.mxu0 0.0
    %146 = vmatmul.mubr.f32.gmra.mrb[0].mxu0 %v58
    %v147 = vpop.f32.mrb[0].mxu0
    %v148 = vadd.f32 %v55, %v147
    %v149 = vpop.f32.mrb[0].mxu0
    %150 = vmatprep.mubr.f32.mxu0 0.0
    %151 = vmatmul.mubr.f32.gmra.mrb[0].mxu0 %v61
    %v152 = vpop.f32.mrb[0].mxu0
    %v153 = vadd.f32 %v55, %v152
    %v154 = vpop.f32.mrb[0].mxu0
    %155 = vmatprep.mubr.f32.mxu0 0.0
    %156 = vmatmul.mubr.f32.gmra.mrb[0].mxu0 %v64
    %v157 = vpop.f32.mrb[0].mxu0
    %v158 = vadd.f32 %v55, %v157
    %v159 = vpop.f32.mrb[0].mxu0
    %160 = vmatprep.mubr.f32.mxu0 0.0
    %161 = vmatmul.mubr.f32.gmra.mrb[0].mxu0 %v67
    %v162 = vpop.f32.mrb[0].mxu0
    %v163 = vadd.f32 %v55, %v162
    %v164 = vpop.f32.mrb[0].mxu0
    %165 = vmatprep.mubr.f32.mxu0 0.0
    %166 = vmatmul.mubr.f32.gmra.mrb[0].mxu0 %v70
    %v167 = vpop.f32.mrb[0].mxu0
    %v168 = vadd.f32 %v55, %v167
    %v169 = vpop.f32.mrb[0].mxu0
    %170 = vmatprep.mubr.f32.mxu0 0.0
    %171 = vmatmul.mubr.f32.gmra.mrb[0].mxu0 %v73
    %v172 = vpop.f32.mrb[0].mxu0
    %v173 = vadd.f32 %v55, %v172
    %v174 = vpop.f32.mrb[0].mxu0
    %175 = vmatprep.mubr.f32.mxu0 0.0
    %176 = vmatmul.mubr.f32.gmra.mrb[0].mxu0 %v76
    %v177 = vpop.f32.mrb[0].mxu0
    %v178 = vadd.f32 %v55, %v177
    %v179 = vpop.f32.mrb[0].mxu0
    %180 = vmatprep.mubr.f32.mxu0 0.0
    %181 = vmatmul.mubr.f32.gmra.mrb[0].mxu0 %v79
    %v182 = vpop.f32.mrb[0].mxu0
    %v183 = vadd.f32 %v55, %v182
    %v184 = vpop.f32.mrb[0].mxu0
    %185 = vdwg.mxu0
    %v186 = vld [vmem:[%s4] sm:$0xff]
    %v187 = vld [vmem:[%s4 + $0x8] sm:$0xff]
    %v188 = vld [vmem:[%s4 + $0x10] sm:$0xff]
    %v189 = vld [vmem:[%s4 + $0x18] sm:$0xff]
    %v190 = vlaneseq
    %v191 = vshrl.u32 %v190, 7
    %v192 = vsub.s32 0, %v191
    %v193 = vrot.slane %v34, %v192
    %v195 = vsel %vm56, 0.0, 0
    %197 = vmatprep.subr.mxu0 0.0
    %198 = vmatpush1.msra.mxu0 %v186
    %199 = vmatprep.subr.mxu0 0.0
    %200 = vmatpush1.msra.mxu0 %v187
    %201 = vmatprep.subr.mxu0 0.0
    %202 = vmatpush1.msra.mxu0 %v188
    %203 = vmatprep.subr.mxu0 0.0
    %204 = vmatpush1.msra.mxu0 %v189
    %205 = vmatprep.subr.mxu0 0.0
    %206 = vmatpush1.msra.mxu0 0.0
    %207 = vmatprep.subr.mxu0 0.0
    %208 = vmatpush1.msra.mxu0 0.0
    %209 = vmatprep.subr.mxu0 0.0
    %210 = vmatpush1.msra.mxu0 0.0
    %211 = vmatprep.subr.mxu0 0.0
    %212 = vmatpush1.msra.mxu0 0.0
    %213 = vmatprep.subr.mxu0 0.0
    %214 = vmatpush1.msra.mxu0 0.0
    %215 = vmatprep.subr.mxu0 0.0
    %216 = vmatpush1.msra.mxu0 0.0
    %217 = vmatprep.subr.mxu0 0.0
    %218 = vmatpush1.msra.mxu0 0.0
    %219 = vmatprep.subr.mxu0 0.0
    %220 = vmatpush1.msra.mxu0 0.0
    %221 = vmatprep.subr.mxu0 0.0
    %222 = vmatpush1.msra.mxu0 0.0
    %223 = vmatprep.subr.mxu0 0.0
    %224 = vmatpush1.msra.mxu0 0.0
    %225 = vmatprep.subr.mxu0 0.0
    %226 = vmatpush1.msra.mxu0 0.0
    %227 = vmatprep.subr.mxu0 0.0
    %228 = vmatpush1.msra.mxu0 0.0
    %229 = vmatprep.subr.mxu0 0.0
    %230 = vmatpush1.msra.mxu0 0.0
    %231 = vmatprep.subr.mxu0 0.0
    %232 = vmatpush1.msra.mxu0 0.0
    %233 = vmatprep.subr.mxu0 0.0
    %234 = vmatpush1.msra.mxu0 0.0
    %235 = vmatprep.subr.mxu0 0.0
    %236 = vmatpush1.msra.mxu0 0.0
    %237 = vmatprep.subr.mxu0 0.0
    %238 = vmatpush1.msra.mxu0 0.0
    %239 = vmatprep.subr.mxu0 0.0
    %240 = vmatpush1.msra.mxu0 0.0
    %241 = vmatprep.subr.mxu0 0.0
    %242 = vmatpush1.msra.mxu0 0.0
    %243 = vmatprep.subr.mxu0 0.0
    %244 = vmatpush1.msra.mxu0 0.0
    %245 = vmatprep.subr.mxu0 0.0
    %246 = vmatpush1.msra.mxu0 0.0
    %247 = vmatprep.subr.mxu0 0.0
    %248 = vmatpush1.msra.mxu0 0.0
    %249 = vmatprep.subr.mxu0 0.0
    %250 = vmatpush1.msra.mxu0 0.0
    %251 = vmatprep.subr.mxu0 0.0
    %252 = vmatpush1.msra.mxu0 0.0
    %253 = vmatprep.subr.mxu0 0.0
    %254 = vmatpush1.msra.mxu0 0.0
    %255 = vmatprep.subr.mxu0 0.0
    %256 = vmatpush1.msra.mxu0 0.0
    %257 = vmatprep.subr.mxu0 0.0
    %258 = vmatpush1.msra.mxu0 0.0
    %259 = vmatprep.subr.mxu0 0.0
    %260 = vmatpush1.msra.mxu0 0.0
    %261 = vmatprep.mubr.f32.mxu0 0.0
    %262 = vmatmul.mubr.f32.gmra.mrb[0].mxu0 %v195
    %v263 = vpop.f32.mrb[0].mxu0
    %v264 = vadd.f32 %v193, %v263
    %v265 = vpop.f32.mrb[0].mxu0
    %266 = vdwg.mxu0
    %v267 = vadd.f32 %v148, %v264
    %v268 = vxor.u32 %v267, 2147483648
    %v269 = vmul.f32 %v268, 1.442695
    %v270 = vpow.pop %v269
    %v271 = vadd.f32 %v270, 1.0
    %v272 = vrcp.pop %v271
    %v273 = vmul.f32 1.0, %v272
    %275 = vrot.lane.b32.xlu0 %v264, 64
    %v276 = vpop.permute.xlu0 %275
    %v278 = vmul.f32 %v273, %v276
    %280 = vrot.lane.b32.xlu0 %v278, 64
    %v281 = vpop.permute.xlu0 %280
    %v283 = vadd.f32 %v148, %v281
    %v284 = vtanh.pop %v283
    %v285 = vsub.f32 0.0, %v284
    %287 = vrot.lane.b32.xlu0 %v285, 96
    %v288 = vpop.permute.xlu0 %287
    %v290 = vmul.f32 %v273, %v288
    %292 = vrot.lane.b32.xlu0 %v290, 32
    %v293 = vpop.permute.xlu0 %292
    %v295 = vadd.f32 %v284, %v293
    %297 = vrot.lane.b32.xlu0 %v295, 64
    %v298 = vpop.permute.xlu0 %297
    %v299 = vsel %vm56, %v298, 0
    %301 = vmatprep.subr.mxu0 0.0
    %302 = vmatpush1.msra.mxu0 %v186
    %303 = vmatprep.subr.mxu0 0.0
    %304 = vmatpush1.msra.mxu0 %v187
    %305 = vmatprep.subr.mxu0 0.0
    %306 = vmatpush1.msra.mxu0 %v188
    %307 = vmatprep.subr.mxu0 0.0
    %308 = vmatpush1.msra.mxu0 %v189
    %309 = vmatprep.subr.mxu0 0.0
    %310 = vmatpush1.msra.mxu0 0.0
    %311 = vmatprep.subr.mxu0 0.0
    %312 = vmatpush1.msra.mxu0 0.0
    %313 = vmatprep.subr.mxu0 0.0
    %314 = vmatpush1.msra.mxu0 0.0
    %315 = vmatprep.subr.mxu0 0.0
    %316 = vmatpush1.msra.mxu0 0.0
    %317 = vmatprep.subr.mxu0 0.0
    %318 = vmatpush1.msra.mxu0 0.0
    %319 = vmatprep.subr.mxu0 0.0
    %320 = vmatpush1.msra.mxu0 0.0
    %321 = vmatprep.subr.mxu0 0.0
    %322 = vmatpush1.msra.mxu0 0.0
    %323 = vmatprep.subr.mxu0 0.0
    %324 = vmatpush1.msra.mxu0 0.0
    %325 = vmatprep.subr.mxu0 0.0
    %326 = vmatpush1.msra.mxu0 0.0
    %327 = vmatprep.subr.mxu0 0.0
    %328 = vmatpush1.msra.mxu0 0.0
    %329 = vmatprep.subr.mxu0 0.0
    %330 = vmatpush1.msra.mxu0 0.0
    %331 = vmatprep.subr.mxu0 0.0
    %332 = vmatpush1.msra.mxu0 0.0
    %333 = vmatprep.subr.mxu0 0.0
    %334 = vmatpush1.msra.mxu0 0.0
    %335 = vmatprep.subr.mxu0 0.0
    %336 = vmatpush1.msra.mxu0 0.0
    %337 = vmatprep.subr.mxu0 0.0
    %338 = vmatpush1.msra.mxu0 0.0
    %339 = vmatprep.subr.mxu0 0.0
    %340 = vmatpush1.msra.mxu0 0.0
    %341 = vmatprep.subr.mxu0 0.0
    %342 = vmatpush1.msra.mxu0 0.0
    %343 = vmatprep.subr.mxu0 0.0
    %344 = vmatpush1.msra.mxu0 0.0
    %345 = vmatprep.subr.mxu0 0.0
    %346 = vmatpush1.msra.mxu0 0.0
    %347 = vmatprep.subr.mxu0 0.0
    %348 = vmatpush1.msra.mxu0 0.0
    %349 = vmatprep.subr.mxu0 0.0
    %350 = vmatpush1.msra.mxu0 0.0
    %351 = vmatprep.subr.mxu0 0.0
    %352 = vmatpush1.msra.mxu0 0.0
    %353 = vmatprep.subr.mxu0 0.0
    %354 = vmatpush1.msra.mxu0 0.0
    %355 = vmatprep.subr.mxu0 0.0
    %356 = vmatpush1.msra.mxu0 0.0
    %357 = vmatprep.subr.mxu0 0.0
    %358 = vmatpush1.msra.mxu0 0.0
    %359 = vmatprep.subr.mxu0 0.0
    %360 = vmatpush1.msra.mxu0 0.0
    %361 = vmatprep.subr.mxu0 0.0
    %362 = vmatpush1.msra.mxu0 0.0
    %363 = vmatprep.subr.mxu0 0.0
    %364 = vmatpush1.msra.mxu0 0.0
    %365 = vmatprep.mubr.f32.mxu0 0.0
    %366 = vmatmul.mubr.f32.gmra.mrb[0].mxu0 %v299
    %v367 = vpop.f32.mrb[0].mxu0
    %v368 = vadd.f32 %v193, %v367
    %v369 = vpop.f32.mrb[0].mxu0
    %370 = vdwg.mxu0
    %v371 = vadd.f32 %v153, %v368
    %v372 = vxor.u32 %v371, 2147483648
    %v373 = vmul.f32 %v372, 1.442695
    %v374 = vpow.pop %v373
    %v375 = vadd.f32 %v374, 1.0
    %v376 = vrcp.pop %v375
    %v377 = vmul.f32 1.0, %v376
    %379 = vrot.lane.b32.xlu0 %v368, 64
    %v380 = vpop.permute.xlu0 %379
    %v382 = vmul.f32 %v377, %v380
    %384 = vrot.lane.b32.xlu0 %v382, 64
    %v385 = vpop.permute.xlu0 %384
    %v387 = vadd.f32 %v153, %v385
    %v388 = vtanh.pop %v387
    %v389 = vsub.f32 %v295, %v388
    %391 = vrot.lane.b32.xlu0 %v389, 96
    %v392 = vpop.permute.xlu0 %391
    %v394 = vmul.f32 %v377, %v392
    %396 = vrot.lane.b32.xlu0 %v394, 32
    %v397 = vpop.permute.xlu0 %396
    %v399 = vadd.f32 %v388, %v397
    %401 = vrot.lane.b32.xlu0 %v399, 64
    %v402 = vpop.permute.xlu0 %401
    %v403 = vsel %vm56, %v402, 0
    %405 = vmatprep.subr.mxu0 0.0
    %406 = vmatpush1.msra.mxu0 %v186
    %407 = vmatprep.subr.mxu0 0.0
    %408 = vmatpush1.msra.mxu0 %v187
    %409 = vmatprep.subr.mxu0 0.0
    %410 = vmatpush1.msra.mxu0 %v188
    %411 = vmatprep.subr.mxu0 0.0
    %412 = vmatpush1.msra.mxu0 %v189
    %413 = vmatprep.subr.mxu0 0.0
    %414 = vmatpush1.msra.mxu0 0.0
    %415 = vmatprep.subr.mxu0 0.0
    %416 = vmatpush1.msra.mxu0 0.0
    %417 = vmatprep.subr.mxu0 0.0
    %418 = vmatpush1.msra.mxu0 0.0
    %419 = vmatprep.subr.mxu0 0.0
    %420 = vmatpush1.msra.mxu0 0.0
    %421 = vmatprep.subr.mxu0 0.0
    %422 = vmatpush1.msra.mxu0 0.0
    %423 = vmatprep.subr.mxu0 0.0
    %424 = vmatpush1.msra.mxu0 0.0
    %425 = vmatprep.subr.mxu0 0.0
    %426 = vmatpush1.msra.mxu0 0.0
    %427 = vmatprep.subr.mxu0 0.0
    %428 = vmatpush1.msra.mxu0 0.0
    %429 = vmatprep.subr.mxu0 0.0
    %430 = vmatpush1.msra.mxu0 0.0
    %431 = vmatprep.subr.mxu0 0.0
    %432 = vmatpush1.msra.mxu0 0.0
    %433 = vmatprep.subr.mxu0 0.0
    %434 = vmatpush1.msra.mxu0 0.0
    %435 = vmatprep.subr.mxu0 0.0
    %436 = vmatpush1.msra.mxu0 0.0
    %437 = vmatprep.subr.mxu0 0.0
    %438 = vmatpush1.msra.mxu0 0.0
    %439 = vmatprep.subr.mxu0 0.0
    %440 = vmatpush1.msra.mxu0 0.0
    %441 = vmatprep.subr.mxu0 0.0
    %442 = vmatpush1.msra.mxu0 0.0
    %443 = vmatprep.subr.mxu0 0.0
    %444 = vmatpush1.msra.mxu0 0.0
    %445 = vmatprep.subr.mxu0 0.0
    %446 = vmatpush1.msra.mxu0 0.0
    %447 = vmatprep.subr.mxu0 0.0
    %448 = vmatpush1.msra.mxu0 0.0
    %449 = vmatprep.subr.mxu0 0.0
    %450 = vmatpush1.msra.mxu0 0.0
    %451 = vmatprep.subr.mxu0 0.0
    %452 = vmatpush1.msra.mxu0 0.0
    %453 = vmatprep.subr.mxu0 0.0
    %454 = vmatpush1.msra.mxu0 0.0
    %455 = vmatprep.subr.mxu0 0.0
    %456 = vmatpush1.msra.mxu0 0.0
    %457 = vmatprep.subr.mxu0 0.0
    %458 = vmatpush1.msra.mxu0 0.0
    %459 = vmatprep.subr.mxu0 0.0
    %460 = vmatpush1.msra.mxu0 0.0
    %461 = vmatprep.subr.mxu0 0.0
    %462 = vmatpush1.msra.mxu0 0.0
    %463 = vmatprep.subr.mxu0 0.0
    %464 = vmatpush1.msra.mxu0 0.0
    %465 = vmatprep.subr.mxu0 0.0
    %466 = vmatpush1.msra.mxu0 0.0
    %467 = vmatprep.subr.mxu0 0.0
    %468 = vmatpush1.msra.mxu0 0.0
    %469 = vmatprep.mubr.f32.mxu0 0.0
    %470 = vmatmul.mubr.f32.gmra.mrb[0].mxu0 %v403
    %v471 = vpop.f32.mrb[0].mxu0
    %v472 = vadd.f32 %v193, %v471
    %v473 = vpop.f32.mrb[0].mxu0
    %474 = vdwg.mxu0
    %v475 = vadd.f32 %v158, %v472
    %v476 = vxor.u32 %v475, 2147483648
    %v477 = vmul.f32 %v476, 1.442695
    %v478 = vpow.pop %v477
    %v479 = vadd.f32 %v478, 1.0
    %v480 = vrcp.pop %v479
    %v481 = vmul.f32 1.0, %v480
    %483 = vrot.lane.b32.xlu0 %v472, 64
    %v484 = vpop.permute.xlu0 %483
    %v486 = vmul.f32 %v481, %v484
    %488 = vrot.lane.b32.xlu0 %v486, 64
    %v489 = vpop.permute.xlu0 %488
    %v491 = vadd.f32 %v158, %v489
    %v492 = vtanh.pop %v491
    %v493 = vsub.f32 %v399, %v492
    %495 = vrot.lane.b32.xlu0 %v493, 96
    %v496 = vpop.permute.xlu0 %495
    %v498 = vmul.f32 %v481, %v496
    %500 = vrot.lane.b32.xlu0 %v498, 32
    %v501 = vpop.permute.xlu0 %500
    %v503 = vadd.f32 %v492, %v501
    %505 = vrot.lane.b32.xlu0 %v503, 64
    %v506 = vpop.permute.xlu0 %505
    %v507 = vsel %vm56, %v506, 0
    %509 = vmatprep.subr.mxu0 0.0
    %510 = vmatpush1.msra.mxu0 %v186
    %511 = vmatprep.subr.mxu0 0.0
    %512 = vmatpush1.msra.mxu0 %v187
    %513 = vmatprep.subr.mxu0 0.0
    %514 = vmatpush1.msra.mxu0 %v188
    %515 = vmatprep.subr.mxu0 0.0
    %516 = vmatpush1.msra.mxu0 %v189
    %517 = vmatprep.subr.mxu0 0.0
    %518 = vmatpush1.msra.mxu0 0.0
    %519 = vmatprep.subr.mxu0 0.0
    %520 = vmatpush1.msra.mxu0 0.0
    %521 = vmatprep.subr.mxu0 0.0
    %522 = vmatpush1.msra.mxu0 0.0
    %523 = vmatprep.subr.mxu0 0.0
    %524 = vmatpush1.msra.mxu0 0.0
    %525 = vmatprep.subr.mxu0 0.0
    %526 = vmatpush1.msra.mxu0 0.0
    %527 = vmatprep.subr.mxu0 0.0
    %528 = vmatpush1.msra.mxu0 0.0
    %529 = vmatprep.subr.mxu0 0.0
    %530 = vmatpush1.msra.mxu0 0.0
    %531 = vmatprep.subr.mxu0 0.0
    %532 = vmatpush1.msra.mxu0 0.0
    %533 = vmatprep.subr.mxu0 0.0
    %534 = vmatpush1.msra.mxu0 0.0
    %535 = vmatprep.subr.mxu0 0.0
    %536 = vmatpush1.msra.mxu0 0.0
    %537 = vmatprep.subr.mxu0 0.0
    %538 = vmatpush1.msra.mxu0 0.0
    %539 = vmatprep.subr.mxu0 0.0
    %540 = vmatpush1.msra.mxu0 0.0
    %541 = vmatprep.subr.mxu0 0.0
    %542 = vmatpush1.msra.mxu0 0.0
    %543 = vmatprep.subr.mxu0 0.0
    %544 = vmatpush1.msra.mxu0 0.0
    %545 = vmatprep.subr.mxu0 0.0
    %546 = vmatpush1.msra.mxu0 0.0
    %547 = vmatprep.subr.mxu0 0.0
    %548 = vmatpush1.msra.mxu0 0.0
    %549 = vmatprep.subr.mxu0 0.0
    %550 = vmatpush1.msra.mxu0 0.0
    %551 = vmatprep.subr.mxu0 0.0
    %552 = vmatpush1.msra.mxu0 0.0
    %553 = vmatprep.subr.mxu0 0.0
    %554 = vmatpush1.msra.mxu0 0.0
    %555 = vmatprep.subr.mxu0 0.0
    %556 = vmatpush1.msra.mxu0 0.0
    %557 = vmatprep.subr.mxu0 0.0
    %558 = vmatpush1.msra.mxu0 0.0
    %559 = vmatprep.subr.mxu0 0.0
    %560 = vmatpush1.msra.mxu0 0.0
    %561 = vmatprep.subr.mxu0 0.0
    %562 = vmatpush1.msra.mxu0 0.0
    %563 = vmatprep.subr.mxu0 0.0
    %564 = vmatpush1.msra.mxu0 0.0
    %565 = vmatprep.subr.mxu0 0.0
    %566 = vmatpush1.msra.mxu0 0.0
    %567 = vmatprep.subr.mxu0 0.0
    %568 = vmatpush1.msra.mxu0 0.0
    %569 = vmatprep.subr.mxu0 0.0
    %570 = vmatpush1.msra.mxu0 0.0
    %571 = vmatprep.subr.mxu0 0.0
    %572 = vmatpush1.msra.mxu0 0.0
    %573 = vmatprep.mubr.f32.mxu0 0.0
    %574 = vmatmul.mubr.f32.gmra.mrb[0].mxu0 %v507
    %v575 = vpop.f32.mrb[0].mxu0
    %v576 = vadd.f32 %v193, %v575
    %v577 = vpop.f32.mrb[0].mxu0
    %578 = vdwg.mxu0
    %v579 = vadd.f32 %v163, %v576
    %v580 = vxor.u32 %v579, 2147483648
    %v581 = vmul.f32 %v580, 1.442695
    %v582 = vpow.pop %v581
    %v583 = vadd.f32 %v582, 1.0
    %v584 = vrcp.pop %v583
    %v585 = vmul.f32 1.0, %v584
    %587 = vrot.lane.b32.xlu0 %v576, 64
    %v588 = vpop.permute.xlu0 %587
    %v590 = vmul.f32 %v585, %v588
    %592 = vrot.lane.b32.xlu0 %v590, 64
    %v593 = vpop.permute.xlu0 %592
    %v595 = vadd.f32 %v163, %v593
    %v596 = vtanh.pop %v595
    %v597 = vsub.f32 %v503, %v596
    %599 = vrot.lane.b32.xlu0 %v597, 96
    %v600 = vpop.permute.xlu0 %599
    %v602 = vmul.f32 %v585, %v600
    %604 = vrot.lane.b32.xlu0 %v602, 32
    %v605 = vpop.permute.xlu0 %604
    %v607 = vadd.f32 %v596, %v605
    %609 = vrot.lane.b32.xlu0 %v607, 64
    %v610 = vpop.permute.xlu0 %609
    %v611 = vsel %vm56, %v610, 0
    %613 = vmatprep.subr.mxu0 0.0
    %614 = vmatpush1.msra.mxu0 %v186
    %615 = vmatprep.subr.mxu0 0.0
    %616 = vmatpush1.msra.mxu0 %v187
    %617 = vmatprep.subr.mxu0 0.0
    %618 = vmatpush1.msra.mxu0 %v188
    %619 = vmatprep.subr.mxu0 0.0
    %620 = vmatpush1.msra.mxu0 %v189
    %621 = vmatprep.subr.mxu0 0.0
    %622 = vmatpush1.msra.mxu0 0.0
    %623 = vmatprep.subr.mxu0 0.0
    %624 = vmatpush1.msra.mxu0 0.0
    %625 = vmatprep.subr.mxu0 0.0
    %626 = vmatpush1.msra.mxu0 0.0
    %627 = vmatprep.subr.mxu0 0.0
    %628 = vmatpush1.msra.mxu0 0.0
    %629 = vmatprep.subr.mxu0 0.0
    %630 = vmatpush1.msra.mxu0 0.0
    %631 = vmatprep.subr.mxu0 0.0
    %632 = vmatpush1.msra.mxu0 0.0
    %633 = vmatprep.subr.mxu0 0.0
    %634 = vmatpush1.msra.mxu0 0.0
    %635 = vmatprep.subr.mxu0 0.0
    %636 = vmatpush1.msra.mxu0 0.0
    %637 = vmatprep.subr.mxu0 0.0
    %638 = vmatpush1.msra.mxu0 0.0
    %639 = vmatprep.subr.mxu0 0.0
    %640 = vmatpush1.msra.mxu0 0.0
    %641 = vmatprep.subr.mxu0 0.0
    %642 = vmatpush1.msra.mxu0 0.0
    %643 = vmatprep.subr.mxu0 0.0
    %644 = vmatpush1.msra.mxu0 0.0
    %645 = vmatprep.subr.mxu0 0.0
    %646 = vmatpush1.msra.mxu0 0.0
    %647 = vmatprep.subr.mxu0 0.0
    %648 = vmatpush1.msra.mxu0 0.0
    %649 = vmatprep.subr.mxu0 0.0
    %650 = vmatpush1.msra.mxu0 0.0
    %651 = vmatprep.subr.mxu0 0.0
    %652 = vmatpush1.msra.mxu0 0.0
    %653 = vmatprep.subr.mxu0 0.0
    %654 = vmatpush1.msra.mxu0 0.0
    %655 = vmatprep.subr.mxu0 0.0
    %656 = vmatpush1.msra.mxu0 0.0
    %657 = vmatprep.subr.mxu0 0.0
    %658 = vmatpush1.msra.mxu0 0.0
    %659 = vmatprep.subr.mxu0 0.0
    %660 = vmatpush1.msra.mxu0 0.0
    %661 = vmatprep.subr.mxu0 0.0
    %662 = vmatpush1.msra.mxu0 0.0
    %663 = vmatprep.subr.mxu0 0.0
    %664 = vmatpush1.msra.mxu0 0.0
    %665 = vmatprep.subr.mxu0 0.0
    %666 = vmatpush1.msra.mxu0 0.0
    %667 = vmatprep.subr.mxu0 0.0
    %668 = vmatpush1.msra.mxu0 0.0
    %669 = vmatprep.subr.mxu0 0.0
    %670 = vmatpush1.msra.mxu0 0.0
    %671 = vmatprep.subr.mxu0 0.0
    %672 = vmatpush1.msra.mxu0 0.0
    %673 = vmatprep.subr.mxu0 0.0
    %674 = vmatpush1.msra.mxu0 0.0
    %675 = vmatprep.subr.mxu0 0.0
    %676 = vmatpush1.msra.mxu0 0.0
    %677 = vmatprep.mubr.f32.mxu0 0.0
    %678 = vmatmul.mubr.f32.gmra.mrb[0].mxu0 %v611
    %v679 = vpop.f32.mrb[0].mxu0
    %v680 = vadd.f32 %v193, %v679
    %v681 = vpop.f32.mrb[0].mxu0
    %682 = vdwg.mxu0
    %v683 = vadd.f32 %v168, %v680
    %v684 = vxor.u32 %v683, 2147483648
    %v685 = vmul.f32 %v684, 1.442695
    %v686 = vpow.pop %v685
    %v687 = vadd.f32 %v686, 1.0
    %v688 = vrcp.pop %v687
    %v689 = vmul.f32 1.0, %v688
    %691 = vrot.lane.b32.xlu0 %v680, 64
    %v692 = vpop.permute.xlu0 %691
    %v694 = vmul.f32 %v689, %v692
    %696 = vrot.lane.b32.xlu0 %v694, 64
    %v697 = vpop.permute.xlu0 %696
    %v699 = vadd.f32 %v168, %v697
    %v700 = vtanh.pop %v699
    %v701 = vsub.f32 %v607, %v700
    %703 = vrot.lane.b32.xlu0 %v701, 96
    %v704 = vpop.permute.xlu0 %703
    %v706 = vmul.f32 %v689, %v704
    %708 = vrot.lane.b32.xlu0 %v706, 32
    %v709 = vpop.permute.xlu0 %708
    %v711 = vadd.f32 %v700, %v709
    %713 = vrot.lane.b32.xlu0 %v711, 64
    %v714 = vpop.permute.xlu0 %713
    %v715 = vsel %vm56, %v714, 0
    %717 = vmatprep.subr.mxu0 0.0
    %718 = vmatpush1.msra.mxu0 %v186
    %719 = vmatprep.subr.mxu0 0.0
    %720 = vmatpush1.msra.mxu0 %v187
    %721 = vmatprep.subr.mxu0 0.0
    %722 = vmatpush1.msra.mxu0 %v188
    %723 = vmatprep.subr.mxu0 0.0
    %724 = vmatpush1.msra.mxu0 %v189
    %725 = vmatprep.subr.mxu0 0.0
    %726 = vmatpush1.msra.mxu0 0.0
    %727 = vmatprep.subr.mxu0 0.0
    %728 = vmatpush1.msra.mxu0 0.0
    %729 = vmatprep.subr.mxu0 0.0
    %730 = vmatpush1.msra.mxu0 0.0
    %731 = vmatprep.subr.mxu0 0.0
    %732 = vmatpush1.msra.mxu0 0.0
    %733 = vmatprep.subr.mxu0 0.0
    %734 = vmatpush1.msra.mxu0 0.0
    %735 = vmatprep.subr.mxu0 0.0
    %736 = vmatpush1.msra.mxu0 0.0
    %737 = vmatprep.subr.mxu0 0.0
    %738 = vmatpush1.msra.mxu0 0.0
    %739 = vmatprep.subr.mxu0 0.0
    %740 = vmatpush1.msra.mxu0 0.0
    %741 = vmatprep.subr.mxu0 0.0
    %742 = vmatpush1.msra.mxu0 0.0
    %743 = vmatprep.subr.mxu0 0.0
    %744 = vmatpush1.msra.mxu0 0.0
    %745 = vmatprep.subr.mxu0 0.0
    %746 = vmatpush1.msra.mxu0 0.0
    %747 = vmatprep.subr.mxu0 0.0
    %748 = vmatpush1.msra.mxu0 0.0
    %749 = vmatprep.subr.mxu0 0.0
    %750 = vmatpush1.msra.mxu0 0.0
    %751 = vmatprep.subr.mxu0 0.0
    %752 = vmatpush1.msra.mxu0 0.0
    %753 = vmatprep.subr.mxu0 0.0
    %754 = vmatpush1.msra.mxu0 0.0
    %755 = vmatprep.subr.mxu0 0.0
    %756 = vmatpush1.msra.mxu0 0.0
    %757 = vmatprep.subr.mxu0 0.0
    %758 = vmatpush1.msra.mxu0 0.0
    %759 = vmatprep.subr.mxu0 0.0
    %760 = vmatpush1.msra.mxu0 0.0
    %761 = vmatprep.subr.mxu0 0.0
    %762 = vmatpush1.msra.mxu0 0.0
    %763 = vmatprep.subr.mxu0 0.0
    %764 = vmatpush1.msra.mxu0 0.0
    %765 = vmatprep.subr.mxu0 0.0
    %766 = vmatpush1.msra.mxu0 0.0
    %767 = vmatprep.subr.mxu0 0.0
    %768 = vmatpush1.msra.mxu0 0.0
    %769 = vmatprep.subr.mxu0 0.0
    %770 = vmatpush1.msra.mxu0 0.0
    %771 = vmatprep.subr.mxu0 0.0
    %772 = vmatpush1.msra.mxu0 0.0
    %773 = vmatprep.subr.mxu0 0.0
    %774 = vmatpush1.msra.mxu0 0.0
    %775 = vmatprep.subr.mxu0 0.0
    %776 = vmatpush1.msra.mxu0 0.0
    %777 = vmatprep.subr.mxu0 0.0
    %778 = vmatpush1.msra.mxu0 0.0
    %779 = vmatprep.subr.mxu0 0.0
    %780 = vmatpush1.msra.mxu0 0.0
    %781 = vmatprep.mubr.f32.mxu0 0.0
    %782 = vmatmul.mubr.f32.gmra.mrb[0].mxu0 %v715
    %v783 = vpop.f32.mrb[0].mxu0
    %v784 = vadd.f32 %v193, %v783
    %v785 = vpop.f32.mrb[0].mxu0
    %786 = vdwg.mxu0
    %v787 = vadd.f32 %v173, %v784
    %v788 = vxor.u32 %v787, 2147483648
    %v789 = vmul.f32 %v788, 1.442695
    %v790 = vpow.pop %v789
    %v791 = vadd.f32 %v790, 1.0
    %v792 = vrcp.pop %v791
    %v793 = vmul.f32 1.0, %v792
    %795 = vrot.lane.b32.xlu0 %v784, 64
    %v796 = vpop.permute.xlu0 %795
    %v798 = vmul.f32 %v793, %v796
    %800 = vrot.lane.b32.xlu0 %v798, 64
    %v801 = vpop.permute.xlu0 %800
    %v803 = vadd.f32 %v173, %v801
    %v804 = vtanh.pop %v803
    %v805 = vsub.f32 %v711, %v804
    %807 = vrot.lane.b32.xlu0 %v805, 96
    %v808 = vpop.permute.xlu0 %807
    %v810 = vmul.f32 %v793, %v808
    %812 = vrot.lane.b32.xlu0 %v810, 32
    %v813 = vpop.permute.xlu0 %812
    %v815 = vadd.f32 %v804, %v813
    %817 = vrot.lane.b32.xlu0 %v815, 64
    %v818 = vpop.permute.xlu0 %817
    %v819 = vsel %vm56, %v818, 0
    %821 = vmatprep.subr.mxu0 0.0
    %822 = vmatpush1.msra.mxu0 %v186
    %823 = vmatprep.subr.mxu0 0.0
    %824 = vmatpush1.msra.mxu0 %v187
    %825 = vmatprep.subr.mxu0 0.0
    %826 = vmatpush1.msra.mxu0 %v188
    %827 = vmatprep.subr.mxu0 0.0
    %828 = vmatpush1.msra.mxu0 %v189
    %829 = vmatprep.subr.mxu0 0.0
    %830 = vmatpush1.msra.mxu0 0.0
    %831 = vmatprep.subr.mxu0 0.0
    %832 = vmatpush1.msra.mxu0 0.0
    %833 = vmatprep.subr.mxu0 0.0
    %834 = vmatpush1.msra.mxu0 0.0
    %835 = vmatprep.subr.mxu0 0.0
    %836 = vmatpush1.msra.mxu0 0.0
    %837 = vmatprep.subr.mxu0 0.0
    %838 = vmatpush1.msra.mxu0 0.0
    %839 = vmatprep.subr.mxu0 0.0
    %840 = vmatpush1.msra.mxu0 0.0
    %841 = vmatprep.subr.mxu0 0.0
    %842 = vmatpush1.msra.mxu0 0.0
    %843 = vmatprep.subr.mxu0 0.0
    %844 = vmatpush1.msra.mxu0 0.0
    %845 = vmatprep.subr.mxu0 0.0
    %846 = vmatpush1.msra.mxu0 0.0
    %847 = vmatprep.subr.mxu0 0.0
    %848 = vmatpush1.msra.mxu0 0.0
    %849 = vmatprep.subr.mxu0 0.0
    %850 = vmatpush1.msra.mxu0 0.0
    %851 = vmatprep.subr.mxu0 0.0
    %852 = vmatpush1.msra.mxu0 0.0
    %853 = vmatprep.subr.mxu0 0.0
    %854 = vmatpush1.msra.mxu0 0.0
    %855 = vmatprep.subr.mxu0 0.0
    %856 = vmatpush1.msra.mxu0 0.0
    %857 = vmatprep.subr.mxu0 0.0
    %858 = vmatpush1.msra.mxu0 0.0
    %859 = vmatprep.subr.mxu0 0.0
    %860 = vmatpush1.msra.mxu0 0.0
    %861 = vmatprep.subr.mxu0 0.0
    %862 = vmatpush1.msra.mxu0 0.0
    %863 = vmatprep.subr.mxu0 0.0
    %864 = vmatpush1.msra.mxu0 0.0
    %865 = vmatprep.subr.mxu0 0.0
    %866 = vmatpush1.msra.mxu0 0.0
    %867 = vmatprep.subr.mxu0 0.0
    %868 = vmatpush1.msra.mxu0 0.0
    %869 = vmatprep.subr.mxu0 0.0
    %870 = vmatpush1.msra.mxu0 0.0
    %871 = vmatprep.subr.mxu0 0.0
    %872 = vmatpush1.msra.mxu0 0.0
    %873 = vmatprep.subr.mxu0 0.0
    %874 = vmatpush1.msra.mxu0 0.0
    %875 = vmatprep.subr.mxu0 0.0
    %876 = vmatpush1.msra.mxu0 0.0
    %877 = vmatprep.subr.mxu0 0.0
    %878 = vmatpush1.msra.mxu0 0.0
    %879 = vmatprep.subr.mxu0 0.0
    %880 = vmatpush1.msra.mxu0 0.0
    %881 = vmatprep.subr.mxu0 0.0
    %882 = vmatpush1.msra.mxu0 0.0
    %883 = vmatprep.subr.mxu0 0.0
    %884 = vmatpush1.msra.mxu0 0.0
    %885 = vmatprep.mubr.f32.mxu0 0.0
    %886 = vmatmul.mubr.f32.gmra.mrb[0].mxu0 %v819
    %v887 = vpop.f32.mrb[0].mxu0
    %v888 = vadd.f32 %v193, %v887
    %v889 = vpop.f32.mrb[0].mxu0
    %890 = vdwg.mxu0
    %v891 = vadd.f32 %v178, %v888
    %v892 = vxor.u32 %v891, 2147483648
    %v893 = vmul.f32 %v892, 1.442695
    %v894 = vpow.pop %v893
    %v895 = vadd.f32 %v894, 1.0
    %v896 = vrcp.pop %v895
    %v897 = vmul.f32 1.0, %v896
    %899 = vrot.lane.b32.xlu0 %v888, 64
    %v900 = vpop.permute.xlu0 %899
    %v902 = vmul.f32 %v897, %v900
    %904 = vrot.lane.b32.xlu0 %v902, 64
    %v905 = vpop.permute.xlu0 %904
    %v907 = vadd.f32 %v178, %v905
    %v908 = vtanh.pop %v907
    %v909 = vsub.f32 %v815, %v908
    %911 = vrot.lane.b32.xlu0 %v909, 96
    %v912 = vpop.permute.xlu0 %911
    %v914 = vmul.f32 %v897, %v912
    %916 = vrot.lane.b32.xlu0 %v914, 32
    %v917 = vpop.permute.xlu0 %916
    %v919 = vadd.f32 %v908, %v917
    %921 = vrot.lane.b32.xlu0 %v919, 64
    %v922 = vpop.permute.xlu0 %921
    %v923 = vsel %vm56, %v922, 0
    %925 = vmatprep.subr.mxu0 0.0
    %926 = vmatpush1.msra.mxu0 %v186
    %927 = vmatprep.subr.mxu0 0.0
    %928 = vmatpush1.msra.mxu0 %v187
    %929 = vmatprep.subr.mxu0 0.0
    %930 = vmatpush1.msra.mxu0 %v188
    %931 = vmatprep.subr.mxu0 0.0
    %932 = vmatpush1.msra.mxu0 %v189
    %933 = vmatprep.subr.mxu0 0.0
    %934 = vmatpush1.msra.mxu0 0.0
    %935 = vmatprep.subr.mxu0 0.0
    %936 = vmatpush1.msra.mxu0 0.0
    %937 = vmatprep.subr.mxu0 0.0
    %938 = vmatpush1.msra.mxu0 0.0
    %939 = vmatprep.subr.mxu0 0.0
    %940 = vmatpush1.msra.mxu0 0.0
    %941 = vmatprep.subr.mxu0 0.0
    %942 = vmatpush1.msra.mxu0 0.0
    %943 = vmatprep.subr.mxu0 0.0
    %944 = vmatpush1.msra.mxu0 0.0
    %945 = vmatprep.subr.mxu0 0.0
    %946 = vmatpush1.msra.mxu0 0.0
    %947 = vmatprep.subr.mxu0 0.0
    %948 = vmatpush1.msra.mxu0 0.0
    %949 = vmatprep.subr.mxu0 0.0
    %950 = vmatpush1.msra.mxu0 0.0
    %951 = vmatprep.subr.mxu0 0.0
    %952 = vmatpush1.msra.mxu0 0.0
    %953 = vmatprep.subr.mxu0 0.0
    %954 = vmatpush1.msra.mxu0 0.0
    %955 = vmatprep.subr.mxu0 0.0
    %956 = vmatpush1.msra.mxu0 0.0
    %957 = vmatprep.subr.mxu0 0.0
    %958 = vmatpush1.msra.mxu0 0.0
    %959 = vmatprep.subr.mxu0 0.0
    %960 = vmatpush1.msra.mxu0 0.0
    %961 = vmatprep.subr.mxu0 0.0
    %962 = vmatpush1.msra.mxu0 0.0
    %963 = vmatprep.subr.mxu0 0.0
    %964 = vmatpush1.msra.mxu0 0.0
    %965 = vmatprep.subr.mxu0 0.0
    %966 = vmatpush1.msra.mxu0 0.0
    %967 = vmatprep.subr.mxu0 0.0
    %968 = vmatpush1.msra.mxu0 0.0
    %969 = vmatprep.subr.mxu0 0.0
    %970 = vmatpush1.msra.mxu0 0.0
    %971 = vmatprep.subr.mxu0 0.0
    %972 = vmatpush1.msra.mxu0 0.0
    %973 = vmatprep.subr.mxu0 0.0
    %974 = vmatpush1.msra.mxu0 0.0
    %975 = vmatprep.subr.mxu0 0.0
    %976 = vmatpush1.msra.mxu0 0.0
    %977 = vmatprep.subr.mxu0 0.0
    %978 = vmatpush1.msra.mxu0 0.0
    %979 = vmatprep.subr.mxu0 0.0
    %980 = vmatpush1.msra.mxu0 0.0
    %981 = vmatprep.subr.mxu0 0.0
    %982 = vmatpush1.msra.mxu0 0.0
    %983 = vmatprep.subr.mxu0 0.0
    %984 = vmatpush1.msra.mxu0 0.0
    %985 = vmatprep.subr.mxu0 0.0
    %986 = vmatpush1.msra.mxu0 0.0
    %987 = vmatprep.subr.mxu0 0.0
    %988 = vmatpush1.msra.mxu0 0.0
    %989 = vmatprep.mubr.f32.mxu0 0.0
    %990 = vmatmul.mubr.f32.gmra.mrb[0].mxu0 %v923
    %v991 = vpop.f32.mrb[0].mxu0
    %v992 = vadd.f32 %v193, %v991
    %v993 = vpop.f32.mrb[0].mxu0
    %994 = vdwg.mxu0
    %v995 = vadd.f32 %v183, %v992
    %v996 = vxor.u32 %v995, 2147483648
    %v997 = vmul.f32 %v996, 1.442695
    %v998 = vpow.pop %v997
    %v999 = vadd.f32 %v998, 1.0
    %v1000 = vrcp.pop %v999
    %v1001 = vmul.f32 1.0, %v1000
    %1003 = vrot.lane.b32.xlu0 %v992, 64
    %v1004 = vpop.permute.xlu0 %1003
    %v1006 = vmul.f32 %v1001, %v1004
    %1008 = vrot.lane.b32.xlu0 %v1006, 64
    %v1009 = vpop.permute.xlu0 %1008
    %v1011 = vadd.f32 %v183, %v1009
    %v1012 = vtanh.pop %v1011
    %v1013 = vsub.f32 %v919, %v1012
    %1015 = vrot.lane.b32.xlu0 %v1013, 96
    %v1016 = vpop.permute.xlu0 %1015
    %v1018 = vmul.f32 %v1001, %v1016
    %1020 = vrot.lane.b32.xlu0 %v1018, 32
    %v1021 = vpop.permute.xlu0 %1020
    %v1023 = vadd.f32 %v1012, %v1021
    %v1024 = vld [vmem:[%s1] sm:$0xff]
    %v1025 = vld [vmem:[%s5] sm:$0xff]
    %v1026 = vld [vmem:[%s5 + $0x8] sm:$0xff]
    %v1027 = vld [vmem:[%s5 + $0x10] sm:$0xff]
    %v1028 = vld [vmem:[%s5 + $0x18] sm:$0xff]
    %v1029 = vld [vmem:[%s5 + $0x20] sm:$0xff]
    %v1030 = vld [vmem:[%s5 + $0x28] sm:$0xff]
    %v1031 = vld [vmem:[%s5 + $0x30] sm:$0xff]
    %v1032 = vld [vmem:[%s5 + $0x38] sm:$0xff]
    %v1033 = vld [vmem:[%s5 + $0x40] sm:$0xff]
    %v1034 = vld [vmem:[%s5 + $0x48] sm:$0xff]
    %v1035 = vld [vmem:[%s5 + $0x50] sm:$0xff]
    %v1036 = vld [vmem:[%s5 + $0x58] sm:$0xff]
    %vm1037 = vcmask 523264
    %v1039 = vsel %vm1037, %v1024, 0
    %1041 = vmatprep.subr.mxu0 0.0
    %1042 = vmatpush1.msra.mxu0 %v1029
    %1043 = vmatprep.subr.mxu0 0.0
    %1044 = vmatpush1.msra.mxu0 %v1030
    %1045 = vmatprep.subr.mxu0 0.0
    %1046 = vmatpush1.msra.mxu0 %v1031
    %1047 = vmatprep.subr.mxu0 0.0
    %1048 = vmatpush1.msra.mxu0 %v1032
    %1049 = vmatprep.subr.mxu0 0.0
    %1050 = vmatpush1.msra.mxu0 %v1033
    %1051 = vmatprep.subr.mxu0 0.0
    %1052 = vmatpush1.msra.mxu0 %v1034
    %1053 = vmatprep.subr.mxu0 0.0
    %1054 = vmatpush1.msra.mxu0 %v1035
    %1055 = vmatprep.subr.mxu0 0.0
    %1056 = vmatpush1.msra.mxu0 %v1036
    %1057 = vmatprep.subr.mxu0 0.0
    %1058 = vmatpush1.msra.mxu0 0.0
    %1059 = vmatprep.subr.mxu0 0.0
    %1060 = vmatpush1.msra.mxu0 0.0
    %1061 = vmatprep.subr.mxu0 0.0
    %1062 = vmatpush1.msra.mxu0 0.0
    %1063 = vmatprep.subr.mxu0 0.0
    %1064 = vmatpush1.msra.mxu0 0.0
    %1065 = vmatprep.subr.mxu0 0.0
    %1066 = vmatpush1.msra.mxu0 0.0
    %1067 = vmatprep.subr.mxu0 0.0
    %1068 = vmatpush1.msra.mxu0 0.0
    %1069 = vmatprep.subr.mxu0 0.0
    %1070 = vmatpush1.msra.mxu0 0.0
    %1071 = vmatprep.subr.mxu0 0.0
    %1072 = vmatpush1.msra.mxu0 0.0
    %1073 = vmatprep.subr.mxu0 0.0
    %1074 = vmatpush1.msra.mxu0 0.0
    %1075 = vmatprep.subr.mxu0 0.0
    %1076 = vmatpush1.msra.mxu0 0.0
    %1077 = vmatprep.subr.mxu0 0.0
    %1078 = vmatpush1.msra.mxu0 0.0
    %1079 = vmatprep.subr.mxu0 0.0
    %1080 = vmatpush1.msra.mxu0 0.0
    %1081 = vmatprep.subr.mxu0 0.0
    %1082 = vmatpush1.msra.mxu0 0.0
    %1083 = vmatprep.subr.mxu0 0.0
    %1084 = vmatpush1.msra.mxu0 0.0
    %1085 = vmatprep.subr.mxu0 0.0
    %1086 = vmatpush1.msra.mxu0 0.0
    %1087 = vmatprep.subr.mxu0 0.0
    %1088 = vmatpush1.msra.mxu0 0.0
    %1089 = vmatprep.subr.mxu0 0.0
    %1090 = vmatpush1.msra.mxu0 0.0
    %1091 = vmatprep.subr.mxu0 0.0
    %1092 = vmatpush1.msra.mxu0 0.0
    %1093 = vmatprep.subr.mxu0 0.0
    %1094 = vmatpush1.msra.mxu0 0.0
    %1095 = vmatprep.subr.mxu0 0.0
    %1096 = vmatpush1.msra.mxu0 0.0
    %1097 = vmatprep.subr.mxu0 0.0
    %1098 = vmatpush1.msra.mxu0 0.0
    %1099 = vmatprep.subr.mxu0 0.0
    %1100 = vmatpush1.msra.mxu0 0.0
    %1101 = vmatprep.subr.mxu0 0.0
    %1102 = vmatpush1.msra.mxu0 0.0
    %1103 = vmatprep.subr.mxu0 0.0
    %1104 = vmatpush1.msra.mxu0 0.0
    %1105 = vmatprep.mubr.f32.mxu0 0.0
    %1106 = vmatmul.mubr.f32.gmra.mrb[0].mxu0 %v1039
    %v1107 = vpop.f32.mrb[0].mxu0
    %v1108 = vadd.f32 0.0, %v1107
    %v1109 = vpop.f32.mrb[0].mxu0
    %1110 = vdwg.mxu0
    %1112 = vrot.lane.b32.xlu0 %v1023, 64
    %v1113 = vpop.permute.xlu0 %1112
    %v1114 = vsel %vm56, %v1113, 0
    %1116 = vmatprep.subr.mxu0 0.0
    %1117 = vmatpush1.msra.mxu0 %v1025
    %1118 = vmatprep.subr.mxu0 0.0
    %1119 = vmatpush1.msra.mxu0 %v1026
    %1120 = vmatprep.subr.mxu0 0.0
    %1121 = vmatpush1.msra.mxu0 %v1027
    %1122 = vmatprep.subr.mxu0 0.0
    %1123 = vmatpush1.msra.mxu0 %v1028
    %1124 = vmatprep.subr.mxu0 0.0
    %1125 = vmatpush1.msra.mxu0 0.0
    %1126 = vmatprep.subr.mxu0 0.0
    %1127 = vmatpush1.msra.mxu0 0.0
    %1128 = vmatprep.subr.mxu0 0.0
    %1129 = vmatpush1.msra.mxu0 0.0
    %1130 = vmatprep.subr.mxu0 0.0
    %1131 = vmatpush1.msra.mxu0 0.0
    %1132 = vmatprep.subr.mxu0 0.0
    %1133 = vmatpush1.msra.mxu0 0.0
    %1134 = vmatprep.subr.mxu0 0.0
    %1135 = vmatpush1.msra.mxu0 0.0
    %1136 = vmatprep.subr.mxu0 0.0
    %1137 = vmatpush1.msra.mxu0 0.0
    %1138 = vmatprep.subr.mxu0 0.0
    %1139 = vmatpush1.msra.mxu0 0.0
    %1140 = vmatprep.subr.mxu0 0.0
    %1141 = vmatpush1.msra.mxu0 0.0
    %1142 = vmatprep.subr.mxu0 0.0
    %1143 = vmatpush1.msra.mxu0 0.0
    %1144 = vmatprep.subr.mxu0 0.0
    %1145 = vmatpush1.msra.mxu0 0.0
    %1146 = vmatprep.subr.mxu0 0.0
    %1147 = vmatpush1.msra.mxu0 0.0
    %1148 = vmatprep.subr.mxu0 0.0
    %1149 = vmatpush1.msra.mxu0 0.0
    %1150 = vmatprep.subr.mxu0 0.0
    %1151 = vmatpush1.msra.mxu0 0.0
    %1152 = vmatprep.subr.mxu0 0.0
    %1153 = vmatpush1.msra.mxu0 0.0
    %1154 = vmatprep.subr.mxu0 0.0
    %1155 = vmatpush1.msra.mxu0 0.0
    %1156 = vmatprep.subr.mxu0 0.0
    %1157 = vmatpush1.msra.mxu0 0.0
    %1158 = vmatprep.subr.mxu0 0.0
    %1159 = vmatpush1.msra.mxu0 0.0
    %1160 = vmatprep.subr.mxu0 0.0
    %1161 = vmatpush1.msra.mxu0 0.0
    %1162 = vmatprep.subr.mxu0 0.0
    %1163 = vmatpush1.msra.mxu0 0.0
    %1164 = vmatprep.subr.mxu0 0.0
    %1165 = vmatpush1.msra.mxu0 0.0
    %1166 = vmatprep.subr.mxu0 0.0
    %1167 = vmatpush1.msra.mxu0 0.0
    %1168 = vmatprep.subr.mxu0 0.0
    %1169 = vmatpush1.msra.mxu0 0.0
    %1170 = vmatprep.subr.mxu0 0.0
    %1171 = vmatpush1.msra.mxu0 0.0
    %1172 = vmatprep.subr.mxu0 0.0
    %1173 = vmatpush1.msra.mxu0 0.0
    %1174 = vmatprep.subr.mxu0 0.0
    %1175 = vmatpush1.msra.mxu0 0.0
    %1176 = vmatprep.subr.mxu0 0.0
    %1177 = vmatpush1.msra.mxu0 0.0
    %1178 = vmatprep.subr.mxu0 0.0
    %1179 = vmatpush1.msra.mxu0 0.0
    %1180 = vmatprep.mubr.f32.mxu0 0.0
    %1181 = vmatmul.mubr.f32.gmra.mrb[0].mxu0 %v1114
    %v1182 = vpop.f32.mrb[0].mxu0
    %v1183 = vadd.f32 %v1108, %v1182
    %v1184 = vpop.f32.mrb[0].mxu0
    %1185 = vdwg.mxu0
    %v1186 = vlaneseq
    %v1187 = vshrl.u32 %v1186, 7
    %v1188 = vsub.s32 0, %v1187
    %v1189 = vrot.slane %v35, %v1188
    %v1190 = vadd.f32 %v1183, %v1189
    %v1191 = vmax.f32 %v1190, 0.0
    %v1192 = vlaneseq
    %v1193 = vshrl.u32 %v1192, 7
    %v1194 = vsub.s32 0, %v1193
    %v1195 = vrot.slane %v36, %v1194
    %v1196 = vmul.f32 %v1191, %v1195
    %v1197 = vsel %vm56, %v1196, 0.0
    %1198 = vadd.xlane.f32.xlu0 %v1197
    %v1199 = vpop.xlane.xlu0 %1198
    %v1200 = vlaneseq
    %v1201 = vshrl.u32 %v1200, 7
    %v1202 = vsub.s32 0, %v1201
    %v1203 = vrot.slane %v37, %v1202
    %v1204 = vadd.f32 %v1199, %v1203
    %v1205 = vxor.u32 %v1204, 2147483648
    %v1206 = vmul.f32 %v1205, 1.442695
    %v1207 = vpow.pop %v1206
    %v1208 = vadd.f32 %v1207, 1.0
    %v1209 = vrcp.pop %v1208
    %v1210 = vmul.f32 1.0, %v1209
    %1211 = vrot.lane.b32.xlu0 %v1024, 96
    %v1212 = vpop.permute.xlu0 %1211
    %v1214 = vsub.f32 %v1024, %v1212
    %1216 = vset.pattern.permute.xlu0 0
    %1217 = vperm.xlu0 %1216, %v1210
    %v1218 = vpop.permute.xlu0 %1217
    %v1220 = vmul.f32 %v1218, %v1214
    %1222 = vrot.lane.b32.xlu0 %v1220, 32
    %v1223 = vpop.permute.xlu0 %1222
    %v1225 = vadd.f32 %v1024, %v1223
    %v1226 = vld [vmem:[%s6] sm:$0xff]
    %v1227 = vld [vmem:[%s6 + $0x8] sm:$0xff]
    %v1228 = vld [vmem:[%s6 + $0x10] sm:$0xff]
    %v1229 = vld [vmem:[%s6 + $0x18] sm:$0xff]
    %v1230 = vld [vmem:[%s6 + $0x20] sm:$0xff]
    %v1231 = vld [vmem:[%s6 + $0x28] sm:$0xff]
    %v1232 = vld [vmem:[%s6 + $0x30] sm:$0xff]
    %v1233 = vld [vmem:[%s6 + $0x38] sm:$0xff]
    %v1234 = vld [vmem:[%s2] sm:$0xff]
    %v1236 = vsel %vm56, %v1234, 0
    %1238 = vmatprep.subr.mxu0 0.0
    %1239 = vmatpush1.msra.mxu0 %v1230
    %1240 = vmatprep.subr.mxu0 0.0
    %1241 = vmatpush1.msra.mxu0 %v1231
    %1242 = vmatprep.subr.mxu0 0.0
    %1243 = vmatpush1.msra.mxu0 %v1232
    %1244 = vmatprep.subr.mxu0 0.0
    %1245 = vmatpush1.msra.mxu0 %v1233
    %1246 = vmatprep.subr.mxu0 0.0
    %1247 = vmatpush1.msra.mxu0 0.0
    %1248 = vmatprep.subr.mxu0 0.0
    %1249 = vmatpush1.msra.mxu0 0.0
    %1250 = vmatprep.subr.mxu0 0.0
    %1251 = vmatpush1.msra.mxu0 0.0
    %1252 = vmatprep.subr.mxu0 0.0
    %1253 = vmatpush1.msra.mxu0 0.0
    %1254 = vmatprep.subr.mxu0 0.0
    %1255 = vmatpush1.msra.mxu0 0.0
    %1256 = vmatprep.subr.mxu0 0.0
    %1257 = vmatpush1.msra.mxu0 0.0
    %1258 = vmatprep.subr.mxu0 0.0
    %1259 = vmatpush1.msra.mxu0 0.0
    %1260 = vmatprep.subr.mxu0 0.0
    %1261 = vmatpush1.msra.mxu0 0.0
    %1262 = vmatprep.subr.mxu0 0.0
    %1263 = vmatpush1.msra.mxu0 0.0
    %1264 = vmatprep.subr.mxu0 0.0
    %1265 = vmatpush1.msra.mxu0 0.0
    %1266 = vmatprep.subr.mxu0 0.0
    %1267 = vmatpush1.msra.mxu0 0.0
    %1268 = vmatprep.subr.mxu0 0.0
    %1269 = vmatpush1.msra.mxu0 0.0
    %1270 = vmatprep.subr.mxu0 0.0
    %1271 = vmatpush1.msra.mxu0 0.0
    %1272 = vmatprep.subr.mxu0 0.0
    %1273 = vmatpush1.msra.mxu0 0.0
    %1274 = vmatprep.subr.mxu0 0.0
    %1275 = vmatpush1.msra.mxu0 0.0
    %1276 = vmatprep.subr.mxu0 0.0
    %1277 = vmatpush1.msra.mxu0 0.0
    %1278 = vmatprep.subr.mxu0 0.0
    %1279 = vmatpush1.msra.mxu0 0.0
    %1280 = vmatprep.subr.mxu0 0.0
    %1281 = vmatpush1.msra.mxu0 0.0
    %1282 = vmatprep.subr.mxu0 0.0
    %1283 = vmatpush1.msra.mxu0 0.0
    %1284 = vmatprep.subr.mxu0 0.0
    %1285 = vmatpush1.msra.mxu0 0.0
    %1286 = vmatprep.subr.mxu0 0.0
    %1287 = vmatpush1.msra.mxu0 0.0
    %1288 = vmatprep.subr.mxu0 0.0
    %1289 = vmatpush1.msra.mxu0 0.0
    %1290 = vmatprep.subr.mxu0 0.0
    %1291 = vmatpush1.msra.mxu0 0.0
    %1292 = vmatprep.subr.mxu0 0.0
    %1293 = vmatpush1.msra.mxu0 0.0
    %1294 = vmatprep.subr.mxu0 0.0
    %1295 = vmatpush1.msra.mxu0 0.0
    %1296 = vmatprep.subr.mxu0 0.0
    %1297 = vmatpush1.msra.mxu0 0.0
    %1298 = vmatprep.subr.mxu0 0.0
    %1299 = vmatpush1.msra.mxu0 0.0
    %1300 = vmatprep.subr.mxu0 0.0
    %1301 = vmatpush1.msra.mxu0 0.0
    %1302 = vmatprep.mubr.f32.mxu0 0.0
    %1303 = vmatmul.mubr.f32.gmra.mrb[0].mxu0 %v1236
    %v1304 = vpop.f32.mrb[0].mxu0
    %v1305 = vadd.f32 0.0, %v1304
    %v1306 = vpop.f32.mrb[0].mxu0
    %1307 = vdwg.mxu0
    %1309 = vrot.lane.b32.xlu0 %v1225, 96
    %v1310 = vpop.permute.xlu0 %1309
    %v1311 = vsel %vm56, %v1310, 0
    %1313 = vmatprep.subr.mxu0 0.0
    %1314 = vmatpush1.msra.mxu0 %v1226
    %1315 = vmatprep.subr.mxu0 0.0
    %1316 = vmatpush1.msra.mxu0 %v1227
    %1317 = vmatprep.subr.mxu0 0.0
    %1318 = vmatpush1.msra.mxu0 %v1228
    %1319 = vmatprep.subr.mxu0 0.0
    %1320 = vmatpush1.msra.mxu0 %v1229
    %1321 = vmatprep.subr.mxu0 0.0
    %1322 = vmatpush1.msra.mxu0 0.0
    %1323 = vmatprep.subr.mxu0 0.0
    %1324 = vmatpush1.msra.mxu0 0.0
    %1325 = vmatprep.subr.mxu0 0.0
    %1326 = vmatpush1.msra.mxu0 0.0
    %1327 = vmatprep.subr.mxu0 0.0
    %1328 = vmatpush1.msra.mxu0 0.0
    %1329 = vmatprep.subr.mxu0 0.0
    %1330 = vmatpush1.msra.mxu0 0.0
    %1331 = vmatprep.subr.mxu0 0.0
    %1332 = vmatpush1.msra.mxu0 0.0
    %1333 = vmatprep.subr.mxu0 0.0
    %1334 = vmatpush1.msra.mxu0 0.0
    %1335 = vmatprep.subr.mxu0 0.0
    %1336 = vmatpush1.msra.mxu0 0.0
    %1337 = vmatprep.subr.mxu0 0.0
    %1338 = vmatpush1.msra.mxu0 0.0
    %1339 = vmatprep.subr.mxu0 0.0
    %1340 = vmatpush1.msra.mxu0 0.0
    %1341 = vmatprep.subr.mxu0 0.0
    %1342 = vmatpush1.msra.mxu0 0.0
    %1343 = vmatprep.subr.mxu0 0.0
    %1344 = vmatpush1.msra.mxu0 0.0
    %1345 = vmatprep.subr.mxu0 0.0
    %1346 = vmatpush1.msra.mxu0 0.0
    %1347 = vmatprep.subr.mxu0 0.0
    %1348 = vmatpush1.msra.mxu0 0.0
    %1349 = vmatprep.subr.mxu0 0.0
    %1350 = vmatpush1.msra.mxu0 0.0
    %1351 = vmatprep.subr.mxu0 0.0
    %1352 = vmatpush1.msra.mxu0 0.0
    %1353 = vmatprep.subr.mxu0 0.0
    %1354 = vmatpush1.msra.mxu0 0.0
    %1355 = vmatprep.subr.mxu0 0.0
    %1356 = vmatpush1.msra.mxu0 0.0
    %1357 = vmatprep.subr.mxu0 0.0
    %1358 = vmatpush1.msra.mxu0 0.0
    %1359 = vmatprep.subr.mxu0 0.0
    %1360 = vmatpush1.msra.mxu0 0.0
    %1361 = vmatprep.subr.mxu0 0.0
    %1362 = vmatpush1.msra.mxu0 0.0
    %1363 = vmatprep.subr.mxu0 0.0
    %1364 = vmatpush1.msra.mxu0 0.0
    %1365 = vmatprep.subr.mxu0 0.0
    %1366 = vmatpush1.msra.mxu0 0.0
    %1367 = vmatprep.subr.mxu0 0.0
    %1368 = vmatpush1.msra.mxu0 0.0
    %1369 = vmatprep.subr.mxu0 0.0
    %1370 = vmatpush1.msra.mxu0 0.0
    %1371 = vmatprep.subr.mxu0 0.0
    %1372 = vmatpush1.msra.mxu0 0.0
    %1373 = vmatprep.subr.mxu0 0.0
    %1374 = vmatpush1.msra.mxu0 0.0
    %1375 = vmatprep.subr.mxu0 0.0
    %1376 = vmatpush1.msra.mxu0 0.0
    %1377 = vmatprep.mubr.f32.mxu0 0.0
    %1378 = vmatmul.mubr.f32.gmra.mrb[0].mxu0 %v1311
    %v1379 = vpop.f32.mrb[0].mxu0
    %v1380 = vadd.f32 %v1305, %v1379
    %v1381 = vpop.f32.mrb[0].mxu0
    %1382 = vdwg.mxu0
    %v1383 = vlaneseq
    %v1384 = vshrl.u32 %v1383, 7
    %v1385 = vsub.s32 0, %v1384
    %v1386 = vrot.slane %v38, %v1385
    %v1387 = vadd.f32 %v1380, %v1386
    %v1388 = vld [vmem:[%s7] sm:$0xff]
    %v1389 = vld [vmem:[%s7 + $0x8] sm:$0xff]
    %v1390 = vlaneseq
    %v1391 = vshrl.u32 %v1390, 7
    %v1392 = vsub.s32 0, %v1391
    %v1393 = vrot.slane %v39, %v1392
    %vm1394 = vcmask 130048
    %v1396 = vsel %vm1394, %v1387, 0
    %1398 = vmatprep.subr.mxu0 0.0
    %1399 = vmatpush1.msra.mxu0 %v1388
    %1400 = vmatprep.subr.mxu0 0.0
    %1401 = vmatpush1.msra.mxu0 %v1389
    %1402 = vmatprep.subr.mxu0 0.0
    %1403 = vmatpush1.msra.mxu0 0.0
    %1404 = vmatprep.subr.mxu0 0.0
    %1405 = vmatpush1.msra.mxu0 0.0
    %1406 = vmatprep.subr.mxu0 0.0
    %1407 = vmatpush1.msra.mxu0 0.0
    %1408 = vmatprep.subr.mxu0 0.0
    %1409 = vmatpush1.msra.mxu0 0.0
    %1410 = vmatprep.subr.mxu0 0.0
    %1411 = vmatpush1.msra.mxu0 0.0
    %1412 = vmatprep.subr.mxu0 0.0
    %1413 = vmatpush1.msra.mxu0 0.0
    %1414 = vmatprep.subr.mxu0 0.0
    %1415 = vmatpush1.msra.mxu0 0.0
    %1416 = vmatprep.subr.mxu0 0.0
    %1417 = vmatpush1.msra.mxu0 0.0
    %1418 = vmatprep.subr.mxu0 0.0
    %1419 = vmatpush1.msra.mxu0 0.0
    %1420 = vmatprep.subr.mxu0 0.0
    %1421 = vmatpush1.msra.mxu0 0.0
    %1422 = vmatprep.subr.mxu0 0.0
    %1423 = vmatpush1.msra.mxu0 0.0
    %1424 = vmatprep.subr.mxu0 0.0
    %1425 = vmatpush1.msra.mxu0 0.0
    %1426 = vmatprep.subr.mxu0 0.0
    %1427 = vmatpush1.msra.mxu0 0.0
    %1428 = vmatprep.subr.mxu0 0.0
    %1429 = vmatpush1.msra.mxu0 0.0
    %1430 = vmatprep.subr.mxu0 0.0
    %1431 = vmatpush1.msra.mxu0 0.0
    %1432 = vmatprep.subr.mxu0 0.0
    %1433 = vmatpush1.msra.mxu0 0.0
    %1434 = vmatprep.subr.mxu0 0.0
    %1435 = vmatpush1.msra.mxu0 0.0
    %1436 = vmatprep.subr.mxu0 0.0
    %1437 = vmatpush1.msra.mxu0 0.0
    %1438 = vmatprep.subr.mxu0 0.0
    %1439 = vmatpush1.msra.mxu0 0.0
    %1440 = vmatprep.subr.mxu0 0.0
    %1441 = vmatpush1.msra.mxu0 0.0
    %1442 = vmatprep.subr.mxu0 0.0
    %1443 = vmatpush1.msra.mxu0 0.0
    %1444 = vmatprep.subr.mxu0 0.0
    %1445 = vmatpush1.msra.mxu0 0.0
    %1446 = vmatprep.subr.mxu0 0.0
    %1447 = vmatpush1.msra.mxu0 0.0
    %1448 = vmatprep.subr.mxu0 0.0
    %1449 = vmatpush1.msra.mxu0 0.0
    %1450 = vmatprep.subr.mxu0 0.0
    %1451 = vmatpush1.msra.mxu0 0.0
    %1452 = vmatprep.subr.mxu0 0.0
    %1453 = vmatpush1.msra.mxu0 0.0
    %1454 = vmatprep.subr.mxu0 0.0
    %1455 = vmatpush1.msra.mxu0 0.0
    %1456 = vmatprep.subr.mxu0 0.0
    %1457 = vmatpush1.msra.mxu0 0.0
    %1458 = vmatprep.subr.mxu0 0.0
    %1459 = vmatpush1.msra.mxu0 0.0
    %1460 = vmatprep.subr.mxu0 0.0
    %1461 = vmatpush1.msra.mxu0 0.0
    %1462 = vmatprep.mubr.f32.mxu0 0.0
    %1463 = vmatmul.mubr.f32.gmra.mrb[0].mxu0 %v1396
    %v1464 = vpop.f32.mrb[0].mxu0
    %v1465 = vadd.f32 %v1393, %v1464
    %v1466 = vpop.f32.mrb[0].mxu0
    %1467 = vdwg.mxu0
    %v1468 = vxor.u32 %v1465, 2147483648
    %v1469 = vmul.f32 %v1468, 1.442695
    %v1470 = vpow.pop %v1469
    %v1471 = vadd.f32 %v1470, 1.0
    %v1472 = vrcp.pop %v1471
    %v1473 = vmul.f32 1.0, %v1472
    %1474 = vst [vmem:[#allocation2] sm:$0xff] %v1473
    // Predicated region
    $region38: #{tpu_custom_call.1} parent=1 // pred_check
      _
    $region39: #{tpu_custom_call.1} parent=1 // pred_check_branch
      %1476 = sbr.rel (0) target = $region41
    $region40: #{tpu_custom_call.1} parent=1 // pred_region
      %s1478 = ssub.s32 128, 128
      %1479 = vsyncadd [#allocation3], %s1478
      %s1481 = sshll.u32 [#allocation2], 4
      %s1482 = int_to_ptr.vmem [resolvable:$true] %s1481
      %1484 = dma.vmem_to_hbm [thread:$0]  %s1482, 128, %s9, [#allocation3]
    $region41: #{tpu_custom_call.1} parent=1 // pred_fallthru
      _
    // Predicated region
    $region42: #{tpu_custom_call.1} parent=1 // pred_check
      _
    $region43: #{tpu_custom_call.1} parent=1 // pred_check_branch
      %1486 = sbr.rel (0) target = $region45
    $region44: #{tpu_custom_call.1} parent=1 // pred_region
      %1487 = dma.done [#allocation3], 128
    $region45: #{tpu_custom_call.1} parent=1 // pred_fallthru
      _
    %1488 = vsyncpa [#allocation3], 1

</llo_original>
